<compile_context>
chip_gen: v7x
topology: tpu7x:2x2x1
jax: 0.10.0
libtpu: 0.0.40
codegen_flags: <defaults>
</compile_context>

<pallas_src>
import functools

import jax
import jax.numpy as jnp
from jax import lax
from jax.experimental import pallas as pl
from jax.experimental.pallas import tpu as pltpu


def _make_conv_prelu_kernel(H, W, C, Cout):
    Wp = W + 2          # padded width (also the flat row stride)
    Q = H * Wp          # flat output positions per image (2 garbage cols per row)

    def kernel(x_ref, w_ref, b_ref, a_ref, o_ref):
        # x_ref: (1, C, Fp)      bf16  padded image, spatial flattened with stride Wp
        # w_ref: (9, Cout, C)    bf16  per-tap transposed conv weights
        # b_ref: (Cout, 1)       f32   bias
        # a_ref: (1,)            f32   PReLU alpha (SMEM, scalar path)
        # o_ref: (1, Cout, Q)    f32   conv(+bias+PReLU) output, lane dim = Q
        acc = jnp.zeros((Cout, Q), jnp.float32)
        for kh in range(3):
            for kw in range(3):
                off = kh * Wp + kw
                xt = x_ref[0, :, off:off + Q]          # (C, Q) shifted tap, static slice
                acc = acc + jnp.dot(w_ref[kh * 3 + kw], xt,
                                    preferred_element_type=jnp.float32)
        y = acc + b_ref[...]                            # (Cout, Q) + (Cout, 1)
        alpha = a_ref[0]
        o_ref[0] = jnp.where(y > 0, y, alpha * y).astype(o_ref.dtype)

    return kernel, Q


@functools.partial(jax.jit, static_argnames=("upscale_factor",))
def subpixel_conv_block(x, weight, bias, alpha, *, upscale_factor=2):
    """Forward of SubPixelConvBlock.

    x:      (N, C, H, W)       float32 (NCHW, like PyTorch)
    weight: (C*r^2, C, 3, 3)   float32 (OIHW, like PyTorch Conv2d)
    bias:   (C*r^2,)           float32
    alpha:  (1,)               float32 (PReLU single shared parameter)
    returns (N, C, H*r, W*r)   float32
    """
    N, C, H, W = x.shape
    r = upscale_factor
    Cout = C * r * r
    assert weight.shape == (Cout, C, 3, 3)

    Wp = W + 2
    # Halo pad: 1 row top, 1 col each side, and 2 rows bottom (1 conv halo + 1 slack
    # row so every tap slice off:off+Q stays in bounds).  Then flatten spatial.
    xp = jnp.pad(x, ((0, 0), (0, 0), (1, 2), (1, 1))).astype(jnp.bfloat16)
    Fp = (H + 3) * Wp
    x_flat = xp.reshape(N, C, Fp)                                   # (N, C, Fp) bf16

    # Per-tap weights, transposed for the (Cout, C) @ (C, Q) formulation.
    w_taps = jnp.transpose(weight, (2, 3, 0, 1)).reshape(9, Cout, C).astype(jnp.bfloat16)
    b_mat = bias.astype(jnp.float32).reshape(Cout, 1)
    a_vec = jnp.asarray(alpha, jnp.float32).reshape(1)

    kernel, Q = _make_conv_prelu_kernel(H, W, C, Cout)

    out_flat = pl.pallas_call(
        kernel,
        out_shape=jax.ShapeDtypeStruct((N, Cout, Q), jnp.float32),
        grid_spec=pltpu.PrefetchScalarGridSpec(
            num_scalar_prefetch=0,
            grid=(N,),
            in_specs=[
                pl.BlockSpec((1, C, Fp), lambda n: (n, 0, 0)),          # one image / step
                pl.BlockSpec((9, Cout, C), lambda n: (0, 0, 0)),        # resident weights
                pl.BlockSpec((Cout, 1), lambda n: (0, 0)),              # bias
                pl.BlockSpec(memory_space=pltpu.MemorySpace.SMEM),      # alpha scalar
            ],
            out_specs=pl.BlockSpec((1, Cout, Q), lambda n: (n, 0, 0)),
        ),
        compiler_params=pltpu.CompilerParams(
            dimension_semantics=("parallel",)),
    )(x_flat, w_taps, b_mat, a_vec)

    # Drop the 2 garbage columns per row, then pixel-shuffle (single fused XLA pass).
    y = out_flat.reshape(N, Cout, H, Wp)[:, :, :, :W]                   # conv out, NCHW
    y = y.reshape(N, C, r, r, H, W).transpose(0, 1, 4, 2, 5, 3)
    y = y.reshape(N, C, H * r, W * r)
    return y


def _reference(x, weight, bias, alpha, r):
    """Pure-JAX reference mirroring the PyTorch module (on bf16-rounded inputs)."""
    xb = x.astype(jnp.bfloat16).astype(jnp.float32)
    wb = weight.astype(jnp.bfloat16).astype(jnp.float32)
    y = lax.conv_general_dilated(
        xb, wb, window_strides=(1, 1), padding=((1, 1), (1, 1)),
        dimension_numbers=("NCHW", "OIHW", "NCHW"),
        precision=lax.Precision.HIGHEST)
    y = y + bias.reshape(1, -1, 1, 1)
    N, Crr, H, W = y.shape
    C = Crr // (r * r)
    y = y.reshape(N, C, r, r, H, W).transpose(0, 1, 4, 2, 5, 3).reshape(N, C, H * r, W * r)
    a = jnp.asarray(alpha, jnp.float32).reshape(())
    return jnp.where(y > 0, y, a * y)


if __name__ == "__main__":
    key = jax.random.PRNGKey(0)
    kx, kw, kb = jax.random.split(key, 3)

    N, C, H, W = 2, 4, 16, 16
    r = 2
    Cout = C * r * r

    x = jax.random.normal(kx, (N, C, H, W), dtype=jnp.float32)
    # Synthetic parameters (shapes from nn.Conv2d(C, C*r^2, 3, padding=1) + nn.PReLU()).
    weight = jax.random.normal(kw, (Cout, C, 3, 3), dtype=jnp.float32) * 0.1
    bias = jax.random.normal(kb, (Cout,), dtype=jnp.float32) * 0.1
    alpha = jnp.array([0.25], dtype=jnp.float32)   # nn.PReLU() default init

    out = subpixel_conv_block(x, weight, bias, alpha, upscale_factor=r)
    out = jax.block_until_ready(out)

    ref = _reference(x, weight, bias, alpha, r)
    assert out.shape == (N, C, H * r, W * r), out.shape
    err = float(jnp.max(jnp.abs(out - ref)))
    assert jnp.allclose(out, ref, atol=1e-3, rtol=1e-3), err

    print("KERNEL_OK")
</pallas_src>

<mosaic_0001>
module attributes {stable_mosaic.version = 11 : i64} {
  func.func @kernel(%arg0: i32, %arg1: memref<1x4x342xbf16, #tpu.memory_space<vmem>>, %arg2: memref<9x16x4xbf16, #tpu.memory_space<vmem>>, %arg3: memref<16x1xf32, #tpu.memory_space<vmem>>, %arg4: memref<1xf32, #tpu.memory_space<smem>>, %arg5: memref<1x16x288xf32, #tpu.memory_space<vmem>>) attributes {dimension_semantics = [#tpu.dimension_semantics<parallel>], iteration_bounds = array<i64: 2>, scalar_prefetch = 0 : i64, scratch_operands = 0 : i64, tpu.core_type = #tpu.core_type<tc>, window_params = [{transform_indices = @transform_0, window_bounds = array<i64: 1, 4, 342>}, {pipeline_mode = #tpu.pipeline_mode<synchronous>, transform_indices = @transform_1, window_bounds = array<i64: 9, 16, 4>}, {pipeline_mode = #tpu.pipeline_mode<synchronous>, transform_indices = @transform_2, window_bounds = array<i64: 16, 1>}, {transform_indices = @transform_3, window_bounds = array<i64: 1>}, {transform_indices = @transform_4, window_bounds = array<i64: 1, 16, 288>}]} {
    %cst = arith.constant 0.000000e+00 : f32
    %0 = vector.broadcast %cst : f32 to vector<16x288xf32>
    %c0 = arith.constant 0 : index
    %c0_0 = arith.constant 0 : index
    %c0_1 = arith.constant 0 : index
    %1 = vector.load %arg1[%c0, %c0_0, %c0_1] : memref<1x4x342xbf16, #tpu.memory_space<vmem>>, vector<1x4x288xbf16>
    %2 = vector.shape_cast %1 : vector<1x4x288xbf16> to vector<4x288xbf16>
    %c0_2 = arith.constant 0 : index
    %c0_3 = arith.constant 0 : index
    %c0_4 = arith.constant 0 : index
    %3 = vector.load %arg2[%c0_2, %c0_3, %c0_4] : memref<9x16x4xbf16, #tpu.memory_space<vmem>>, vector<1x16x4xbf16>
    %4 = vector.shape_cast %3 : vector<1x16x4xbf16> to vector<16x4xbf16>
    %cst_5 = arith.constant dense<0.000000e+00> : vector<16x288xf32>
    %5 = tpu.matmul %4, %2, %cst_5 {dimension_numbers = #tpu.dot_dimension_numbers<[1], [0], [0], [1], [0, 0, 1, 1], [], []>} : vector<16x4xbf16>, vector<4x288xbf16>, vector<16x288xf32> -> vector<16x288xf32>
    %6 = arith.addf %0, %5 : vector<16x288xf32>
    %c0_6 = arith.constant 0 : index
    %c0_7 = arith.constant 0 : index
    %c1 = arith.constant 1 : index
    %7 = vector.load %arg1[%c0_6, %c0_7, %c1] : memref<1x4x342xbf16, #tpu.memory_space<vmem>>, vector<1x4x288xbf16>
    %8 = vector.shape_cast %7 : vector<1x4x288xbf16> to vector<4x288xbf16>
    %c1_8 = arith.constant 1 : index
    %c0_9 = arith.constant 0 : index
    %c0_10 = arith.constant 0 : index
    %9 = vector.load %arg2[%c1_8, %c0_9, %c0_10] : memref<9x16x4xbf16, #tpu.memory_space<vmem>>, vector<1x16x4xbf16>
    %10 = vector.shape_cast %9 : vector<1x16x4xbf16> to vector<16x4xbf16>
    %cst_11 = arith.constant dense<0.000000e+00> : vector<16x288xf32>
    %11 = tpu.matmul %10, %8, %cst_11 {dimension_numbers = #tpu.dot_dimension_numbers<[1], [0], [0], [1], [0, 0, 1, 1], [], []>} : vector<16x4xbf16>, vector<4x288xbf16>, vector<16x288xf32> -> vector<16x288xf32>
    %12 = arith.addf %6, %11 : vector<16x288xf32>
    %c0_12 = arith.constant 0 : index
    %c0_13 = arith.constant 0 : index
    %c2 = arith.constant 2 : index
    %13 = vector.load %arg1[%c0_12, %c0_13, %c2] : memref<1x4x342xbf16, #tpu.memory_space<vmem>>, vector<1x4x288xbf16>
    %14 = vector.shape_cast %13 : vector<1x4x288xbf16> to vector<4x288xbf16>
    %c2_14 = arith.constant 2 : index
    %c0_15 = arith.constant 0 : index
    %c0_16 = arith.constant 0 : index
    %15 = vector.load %arg2[%c2_14, %c0_15, %c0_16] : memref<9x16x4xbf16, #tpu.memory_space<vmem>>, vector<1x16x4xbf16>
    %16 = vector.shape_cast %15 : vector<1x16x4xbf16> to vector<16x4xbf16>
    %cst_17 = arith.constant dense<0.000000e+00> : vector<16x288xf32>
    %17 = tpu.matmul %16, %14, %cst_17 {dimension_numbers = #tpu.dot_dimension_numbers<[1], [0], [0], [1], [0, 0, 1, 1], [], []>} : vector<16x4xbf16>, vector<4x288xbf16>, vector<16x288xf32> -> vector<16x288xf32>
    %18 = arith.addf %12, %17 : vector<16x288xf32>
    %c0_18 = arith.constant 0 : index
    %c0_19 = arith.constant 0 : index
    %c18 = arith.constant 18 : index
    %19 = vector.load %arg1[%c0_18, %c0_19, %c18] : memref<1x4x342xbf16, #tpu.memory_space<vmem>>, vector<1x4x288xbf16>
    %20 = vector.shape_cast %19 : vector<1x4x288xbf16> to vector<4x288xbf16>
    %c3 = arith.constant 3 : index
    %c0_20 = arith.constant 0 : index
    %c0_21 = arith.constant 0 : index
    %21 = vector.load %arg2[%c3, %c0_20, %c0_21] : memref<9x16x4xbf16, #tpu.memory_space<vmem>>, vector<1x16x4xbf16>
    %22 = vector.shape_cast %21 : vector<1x16x4xbf16> to vector<16x4xbf16>
    %cst_22 = arith.constant dense<0.000000e+00> : vector<16x288xf32>
    %23 = tpu.matmul %22, %20, %cst_22 {dimension_numbers = #tpu.dot_dimension_numbers<[1], [0], [0], [1], [0, 0, 1, 1], [], []>} : vector<16x4xbf16>, vector<4x288xbf16>, vector<16x288xf32> -> vector<16x288xf32>
    %24 = arith.addf %18, %23 : vector<16x288xf32>
    %c0_23 = arith.constant 0 : index
    %c0_24 = arith.constant 0 : index
    %c19 = arith.constant 19 : index
    %25 = vector.load %arg1[%c0_23, %c0_24, %c19] : memref<1x4x342xbf16, #tpu.memory_space<vmem>>, vector<1x4x288xbf16>
    %26 = vector.shape_cast %25 : vector<1x4x288xbf16> to vector<4x288xbf16>
    %c4 = arith.constant 4 : index
    %c0_25 = arith.constant 0 : index
    %c0_26 = arith.constant 0 : index
    %27 = vector.load %arg2[%c4, %c0_25, %c0_26] : memref<9x16x4xbf16, #tpu.memory_space<vmem>>, vector<1x16x4xbf16>
    %28 = vector.shape_cast %27 : vector<1x16x4xbf16> to vector<16x4xbf16>
    %cst_27 = arith.constant dense<0.000000e+00> : vector<16x288xf32>
    %29 = tpu.matmul %28, %26, %cst_27 {dimension_numbers = #tpu.dot_dimension_numbers<[1], [0], [0], [1], [0, 0, 1, 1], [], []>} : vector<16x4xbf16>, vector<4x288xbf16>, vector<16x288xf32> -> vector<16x288xf32>
    %30 = arith.addf %24, %29 : vector<16x288xf32>
    %c0_28 = arith.constant 0 : index
    %c0_29 = arith.constant 0 : index
    %c20 = arith.constant 20 : index
    %31 = vector.load %arg1[%c0_28, %c0_29, %c20] : memref<1x4x342xbf16, #tpu.memory_space<vmem>>, vector<1x4x288xbf16>
    %32 = vector.shape_cast %31 : vector<1x4x288xbf16> to vector<4x288xbf16>
    %c5 = arith.constant 5 : index
    %c0_30 = arith.constant 0 : index
    %c0_31 = arith.constant 0 : index
    %33 = vector.load %arg2[%c5, %c0_30, %c0_31] : memref<9x16x4xbf16, #tpu.memory_space<vmem>>, vector<1x16x4xbf16>
    %34 = vector.shape_cast %33 : vector<1x16x4xbf16> to vector<16x4xbf16>
    %cst_32 = arith.constant dense<0.000000e+00> : vector<16x288xf32>
    %35 = tpu.matmul %34, %32, %cst_32 {dimension_numbers = #tpu.dot_dimension_numbers<[1], [0], [0], [1], [0, 0, 1, 1], [], []>} : vector<16x4xbf16>, vector<4x288xbf16>, vector<16x288xf32> -> vector<16x288xf32>
    %36 = arith.addf %30, %35 : vector<16x288xf32>
    %c0_33 = arith.constant 0 : index
    %c0_34 = arith.constant 0 : index
    %c36 = arith.constant 36 : index
    %37 = vector.load %arg1[%c0_33, %c0_34, %c36] : memref<1x4x342xbf16, #tpu.memory_space<vmem>>, vector<1x4x288xbf16>
    %38 = vector.shape_cast %37 : vector<1x4x288xbf16> to vector<4x288xbf16>
    %c6 = arith.constant 6 : index
    %c0_35 = arith.constant 0 : index
    %c0_36 = arith.constant 0 : index
    %39 = vector.load %arg2[%c6, %c0_35, %c0_36] : memref<9x16x4xbf16, #tpu.memory_space<vmem>>, vector<1x16x4xbf16>
    %40 = vector.shape_cast %39 : vector<1x16x4xbf16> to vector<16x4xbf16>
    %cst_37 = arith.constant dense<0.000000e+00> : vector<16x288xf32>
    %41 = tpu.matmul %40, %38, %cst_37 {dimension_numbers = #tpu.dot_dimension_numbers<[1], [0], [0], [1], [0, 0, 1, 1], [], []>} : vector<16x4xbf16>, vector<4x288xbf16>, vector<16x288xf32> -> vector<16x288xf32>
    %42 = arith.addf %36, %41 : vector<16x288xf32>
    %c0_38 = arith.constant 0 : index
    %c0_39 = arith.constant 0 : index
    %c37 = arith.constant 37 : index
    %43 = vector.load %arg1[%c0_38, %c0_39, %c37] : memref<1x4x342xbf16, #tpu.memory_space<vmem>>, vector<1x4x288xbf16>
    %44 = vector.shape_cast %43 : vector<1x4x288xbf16> to vector<4x288xbf16>
    %c7 = arith.constant 7 : index
    %c0_40 = arith.constant 0 : index
    %c0_41 = arith.constant 0 : index
    %45 = vector.load %arg2[%c7, %c0_40, %c0_41] : memref<9x16x4xbf16, #tpu.memory_space<vmem>>, vector<1x16x4xbf16>
    %46 = vector.shape_cast %45 : vector<1x16x4xbf16> to vector<16x4xbf16>
    %cst_42 = arith.constant dense<0.000000e+00> : vector<16x288xf32>
    %47 = tpu.matmul %46, %44, %cst_42 {dimension_numbers = #tpu.dot_dimension_numbers<[1], [0], [0], [1], [0, 0, 1, 1], [], []>} : vector<16x4xbf16>, vector<4x288xbf16>, vector<16x288xf32> -> vector<16x288xf32>
    %48 = arith.addf %42, %47 : vector<16x288xf32>
    %c0_43 = arith.constant 0 : index
    %c0_44 = arith.constant 0 : index
    %c38 = arith.constant 38 : index
    %49 = vector.load %arg1[%c0_43, %c0_44, %c38] : memref<1x4x342xbf16, #tpu.memory_space<vmem>>, vector<1x4x288xbf16>
    %50 = vector.shape_cast %49 : vector<1x4x288xbf16> to vector<4x288xbf16>
    %c8 = arith.constant 8 : index
    %c0_45 = arith.constant 0 : index
    %c0_46 = arith.constant 0 : index
    %51 = vector.load %arg2[%c8, %c0_45, %c0_46] : memref<9x16x4xbf16, #tpu.memory_space<vmem>>, vector<1x16x4xbf16>
    %52 = vector.shape_cast %51 : vector<1x16x4xbf16> to vector<16x4xbf16>
    %cst_47 = arith.constant dense<0.000000e+00> : vector<16x288xf32>
    %53 = tpu.matmul %52, %50, %cst_47 {dimension_numbers = #tpu.dot_dimension_numbers<[1], [0], [0], [1], [0, 0, 1, 1], [], []>} : vector<16x4xbf16>, vector<4x288xbf16>, vector<16x288xf32> -> vector<16x288xf32>
    %54 = arith.addf %48, %53 : vector<16x288xf32>
    %c0_48 = arith.constant 0 : index
    %c0_49 = arith.constant 0 : index
    %55 = vector.load %arg3[%c0_48, %c0_49] : memref<16x1xf32, #tpu.memory_space<vmem>>, vector<16x1xf32>
    %56 = vector.broadcast %55 : vector<16x1xf32> to vector<16x288xf32>
    %57 = arith.addf %54, %56 : vector<16x288xf32>
    %c0_50 = arith.constant 0 : index
    %58 = memref.load %arg4[%c0_50] : memref<1xf32, #tpu.memory_space<smem>>
    %cst_51 = arith.constant 0.000000e+00 : f32
    %59 = vector.broadcast %cst_51 : f32 to vector<16x288xf32>
    %60 = arith.cmpf ogt, %57, %59 : vector<16x288xf32>
    %61 = vector.broadcast %58 : f32 to vector<16x288xf32>
    %62 = arith.mulf %61, %57 : vector<16x288xf32>
    %63 = arith.select %60, %57, %62 : vector<16x288xi1>, vector<16x288xf32>
    %c0_52 = arith.constant 0 : index
    %c0_53 = arith.constant 0 : index
    %c0_54 = arith.constant 0 : index
    %64 = vector.load %arg5[%c0_52, %c0_53, %c0_54] : memref<1x16x288xf32, #tpu.memory_space<vmem>>, vector<1x16x288xf32>
    %65 = vector.shape_cast %64 : vector<1x16x288xf32> to vector<16x288xf32>
    %66 = vector.shape_cast %63 : vector<16x288xf32> to vector<1x16x288xf32>
    tpu.vector_store %arg5[%c0_52, %c0_53, %c0_54], %66 {strides = array<i32>} : memref<1x16x288xf32, #tpu.memory_space<vmem>>, vector<1x16x288xf32>,
    return
  }
  func.func @transform_0(%arg0: i32) -> (i32, i32, i32) {
    %c0_i32 = arith.constant 0 : i32
    %c0_i32_0 = arith.constant 0 : i32
    %c0_i32_1 = arith.constant 0 : i32
    return %arg0, %c0_i32, %c0_i32_0 : i32, i32, i32
  }
  func.func @transform_1(%arg0: i32) -> (i32, i32, i32) {
    %c0_i32 = arith.constant 0 : i32
    %c0_i32_0 = arith.constant 0 : i32
    %c0_i32_1 = arith.constant 0 : i32
    %c0_i32_2 = arith.constant 0 : i32
    return %c0_i32, %c0_i32_0, %c0_i32_1 : i32, i32, i32
  }
  func.func @transform_2(%arg0: i32) -> (i32, i32) {
    %c0_i32 = arith.constant 0 : i32
    %c0_i32_0 = arith.constant 0 : i32
    %c0_i32_1 = arith.constant 0 : i32
    return %c0_i32, %c0_i32_0 : i32, i32
  }
  func.func @transform_3(%arg0: i32) -> i32 {
    %c0_i32 = arith.constant 0 : i32
    %c0_i32_0 = arith.constant 0 : i32
    return %c0_i32 : i32
  }
  func.func @transform_4(%arg0: i32) -> (i32, i32, i32) {
    %c0_i32 = arith.constant 0 : i32
    %c0_i32_0 = arith.constant 0 : i32
    %c0_i32_1 = arith.constant 0 : i32
    return %arg0, %c0_i32, %c0_i32_0 : i32, i32, i32
  }
}

</mosaic_0001>

<llo_original>
// kernel: subpixel_conv_block.1
$region0: #{subpixel_conv_block.1}
  #allocation0 [shape = 'u32[]', space=smem, size = 0x4, offset = 0x4, fixed_abs, tag = 'smem constant byte address 0x4 - core index']
  #allocation1 [shape = 'u32[144,128]{1,0:T(1,128)}', space=vmem, size = 0x12000, scoped, tag = 'internal scratch']
  #allocation2 [shape = 'f32[1]{0:T(128)S(6)}', space=smem, size = 0x200, scoped, tag = 'scoped memory for subpixel_conv_block.1']
  %s0 = inlined_call_operand.vmem [shape: bf16[2,4,342], index: 0, kind: input, shape index: {}]
  %s1 = inlined_call_operand.vmem [shape: bf16[9,16,4], index: 1, kind: input, shape index: {}]
  %s2 = inlined_call_operand.vmem [shape: f32[16,1], index: 2, kind: input, shape index: {}]
  %s3 = inlined_call_operand.<no memory space> [shape: f32[1], index: 3, kind: input, shape index: {}]
  %s4 = inlined_call_operand.vmem [shape: f32[2,16,288], index: 4, kind: output, shape index: {}]
  %s5 = sld [smem:[#allocation0]]
  $region49: #{subpixel_conv_block.1} parent=0
    _
  %s7 = ssub.s32 1, %s5
  %s8 = scalar_select 0, %s7, %s5
  %9 = sst [smem:[#allocation2]] %s3
  loop: start=0, step=1, limit=4
  $region2: #{subpixel_conv_block.1} parent=0 // loop_pre_header
    _
  $region3: #{subpixel_conv_block.1} parent=0 // loop_header
    %s11 = sphi 0, %s15
    %p12 = scmp.ge.s32.totalorder %s11, 4
    %s21 = sphi 0, %s23
    %s24 = sphi 0, %s21
    %s25 = sphi 0, %s24
    %s41 = sphi 0, %s25
    %s45 = sphi 0, %s45
    %s47 = sphi 0, %s45
    %s48 = sphi 0, %s47
    %s62 = sphi 0, %s48
    %s66 = sphi 0, %s66
    %s68 = sphi 0, %s66
    %s69 = sphi 0, %s68
    %s83 = sphi 0, %s69
    %s87 = sphi 0, %s87
    %s89 = sphi 0, %s87
    %s90 = sphi 0, %s89
    %s104 = sphi 0, %s90
    %s110 = sphi 0, %s112
    %s113 = sphi 0, %s110
    %s114 = sphi 0, %s113
    %s130 = sphi 0, %s114
  $region4: #{subpixel_conv_block.1} parent=0 // loop_header_branch
    %14 = sbr.rel (%p12) target = $region8
  $region5: #{subpixel_conv_block.1} parent=0 // loop_body
    %s16 = ssub.s32 %s11, 1
    %s17 = ssub.s32 %s11, 2
    %s18 = sadd.s32 %s11, 1
    %s19 = ssub.s32 %s11, %s18
    %p20 = scmp.eq.s32.totalorder %s19, 0
    %s22 = sadd.s32 %s21, 1
    %s23 = scalar_select %p20, %s21, %s22
    %p26 = pneg %p20
    %p27 = scmp.eq.s32.totalorder %s11, 1
    %p28 = por %p26, %p27
    %p29 = scmp.ne.s32.totalorder %s21, %s24
    %p30 = scmp.eq.s32.totalorder %s11, 0
    %p31 = por %p29, %p30
    %p32 = scmp.ne.s32.totalorder %s21, %s24
    %p33 = scmp.eq.s32.totalorder %s16, 1
    %p34 = por %p32, %p33
    %p35 = scmp.ne.s32.totalorder %s24, %s25
    %p36 = scmp.eq.s32.totalorder %s16, 0
    %p37 = por %p35, %p36
    %p38 = scmp.ne.s32.totalorder %s24, %s25
    %p39 = scmp.eq.s32.totalorder %s17, 1
    %p40 = por %p38, %p39
    %p42 = scmp.ne.s32.totalorder %s25, %s41
    %p43 = scmp.eq.s32.totalorder %s17, 0
    %p44 = por %p42, %p43
    %s46 = sadd.s32 %s45, 1
    %p49 = scmp.eq.s32.totalorder %s11, 1
    %p50 = scmp.ne.s32.totalorder %s45, %s47
    %p51 = scmp.eq.s32.totalorder %s11, 0
    %p52 = por %p50, %p51
    %p53 = scmp.ne.s32.totalorder %s45, %s47
    %p54 = scmp.eq.s32.totalorder %s16, 1
    %p55 = por %p53, %p54
    %p56 = scmp.ne.s32.totalorder %s47, %s48
    %p57 = scmp.eq.s32.totalorder %s16, 0
    %p58 = por %p56, %p57
    %p59 = scmp.ne.s32.totalorder %s47, %s48
    %p60 = scmp.eq.s32.totalorder %s17, 1
    %p61 = por %p59, %p60
    %p63 = scmp.ne.s32.totalorder %s48, %s62
    %p64 = scmp.eq.s32.totalorder %s17, 0
    %p65 = por %p63, %p64
    %s67 = sadd.s32 %s66, 1
    %p70 = scmp.eq.s32.totalorder %s11, 1
    %p71 = scmp.ne.s32.totalorder %s66, %s68
    %p72 = scmp.eq.s32.totalorder %s11, 0
    %p73 = por %p71, %p72
    %p74 = scmp.ne.s32.totalorder %s66, %s68
    %p75 = scmp.eq.s32.totalorder %s16, 1
    %p76 = por %p74, %p75
    %p77 = scmp.ne.s32.totalorder %s68, %s69
    %p78 = scmp.eq.s32.totalorder %s16, 0
    %p79 = por %p77, %p78
    %p80 = scmp.ne.s32.totalorder %s68, %s69
    %p81 = scmp.eq.s32.totalorder %s17, 1
    %p82 = por %p80, %p81
    %p84 = scmp.ne.s32.totalorder %s69, %s83
    %p85 = scmp.eq.s32.totalorder %s17, 0
    %p86 = por %p84, %p85
    %s88 = sadd.s32 %s87, 1
    %p91 = scmp.eq.s32.totalorder %s11, 1
    %p92 = scmp.ne.s32.totalorder %s87, %s89
    %p93 = scmp.eq.s32.totalorder %s11, 0
    %p94 = por %p92, %p93
    %p95 = scmp.ne.s32.totalorder %s87, %s89
    %p96 = scmp.eq.s32.totalorder %s16, 1
    %p97 = por %p95, %p96
    %p98 = scmp.ne.s32.totalorder %s89, %s90
    %p99 = scmp.eq.s32.totalorder %s16, 0
    %p100 = por %p98, %p99
    %p101 = scmp.ne.s32.totalorder %s89, %s90
    %p102 = scmp.eq.s32.totalorder %s17, 1
    %p103 = por %p101, %p102
    %p105 = scmp.ne.s32.totalorder %s90, %s104
    %p106 = scmp.eq.s32.totalorder %s17, 0
    %p107 = por %p105, %p106
    %s108 = ssub.s32 %s11, %s18
    %p109 = scmp.eq.s32.totalorder %s108, 0
    %s111 = sadd.s32 %s110, 1
    %s112 = scalar_select %p109, %s110, %s111
    %p115 = pneg %p109
    %p116 = scmp.eq.s32.totalorder %s11, 1
    %p117 = por %p115, %p116
    %p118 = scmp.ne.s32.totalorder %s110, %s113
    %p119 = scmp.eq.s32.totalorder %s11, 0
    %p120 = por %p118, %p119
    %p121 = scmp.ne.s32.totalorder %s110, %s113
    %p122 = scmp.eq.s32.totalorder %s16, 1
    %p123 = por %p121, %p122
    %p124 = scmp.ne.s32.totalorder %s113, %s114
    %p125 = scmp.eq.s32.totalorder %s16, 0
    %p126 = por %p124, %p125
    %p127 = scmp.ne.s32.totalorder %s113, %s114
    %p128 = scmp.eq.s32.totalorder %s17, 1
    %p129 = por %p127, %p128
    %p131 = scmp.ne.s32.totalorder %s114, %s130
    %p132 = scmp.eq.s32.totalorder %s17, 0
    %p133 = por %p131, %p132
    %p134 = scmp.le.s32.totalorder 1, %s11
    %p135 = scmp.lt.s32.totalorder %s11, 3
    %p136 = pnand %p134, %p135
    %p137 = pneg %p136
    // Predicated region
    $region9: #{subpixel_conv_block.1} parent=5 // pred_check
      _
    $region10: #{subpixel_conv_block.1} parent=5 // pred_check_branch
      %139 = sbr.rel (%p136) target = $region12
    $region11: #{subpixel_conv_block.1} parent=5 // pred_region
      %s140 = ssub.s32 %s11, 1
      // Predicated region
      $region13: #{subpixel_conv_block.1} parent=11 // pred_check
        %p141 = pneg %p58
      $region14: #{subpixel_conv_block.1} parent=11 // pred_check_branch
        %143 = sbr.rel (%p141) target = $region16
      $region15: #{subpixel_conv_block.1} parent=11 // pred_region
        _
      $region16: #{subpixel_conv_block.1} parent=11 // pred_fallthru
        _
      // Predicated region
      $region17: #{subpixel_conv_block.1} parent=11 // pred_check
        %p144 = pneg %p79
      $region18: #{subpixel_conv_block.1} parent=11 // pred_check_branch
        %146 = sbr.rel (%p144) target = $region20
      $region19: #{subpixel_conv_block.1} parent=11 // pred_region
        _
      $region20: #{subpixel_conv_block.1} parent=11 // pred_fallthru
        _
      // Predicated region
      $region21: #{subpixel_conv_block.1} parent=11 // pred_check
        %p147 = pneg %p100
      $region22: #{subpixel_conv_block.1} parent=11 // pred_check_branch
        %149 = sbr.rel (%p147) target = $region24
      $region23: #{subpixel_conv_block.1} parent=11 // pred_region
        _
      $region24: #{subpixel_conv_block.1} parent=11 // pred_fallthru
        _
    $region12: #{subpixel_conv_block.1} parent=5 // pred_fallthru
      _
    %p150 = scmp.lt.s32.totalorder %s11, 2
    // Predicated region
    $region25: #{subpixel_conv_block.1} parent=5 // pred_check
      %p151 = pneg %p150
    $region26: #{subpixel_conv_block.1} parent=5 // pred_check_branch
      %153 = sbr.rel (%p151) target = $region28
    $region27: #{subpixel_conv_block.1} parent=5 // pred_region
      // Predicated region
      $region29: #{subpixel_conv_block.1} parent=27 // pred_check
        %p154 = pneg %p31
      $region30: #{subpixel_conv_block.1} parent=27 // pred_check_branch
        %156 = sbr.rel (%p154) target = $region32
      $region31: #{subpixel_conv_block.1} parent=27 // pred_region
        %p157 = scmp.lt.s32.totalorder %s11, 1
        %s158 = scalar_select %p157, %s11, 1
        %s159 = smul.addr %s158, 3
        %s160 = smul.addr %s159, 2
        %s161 = scalar_lea.vmem %s0, %s160
      $region32: #{subpixel_conv_block.1} parent=27 // pred_fallthru
        _
    $region28: #{subpixel_conv_block.1} parent=5 // pred_fallthru
      _
    %p162 = scmp.le.s32.totalorder 1, %s11
    %p163 = scmp.lt.s32.totalorder %s11, 3
    %p164 = pnand %p162, %p163
    %p165 = pneg %p164
    // Predicated region
    $region33: #{subpixel_conv_block.1} parent=5 // pred_check
      _
    $region34: #{subpixel_conv_block.1} parent=5 // pred_check_branch
      %167 = sbr.rel (%p164) target = $region36
    $region35: #{subpixel_conv_block.1} parent=5 // pred_region
      %s168 = ssub.s32 %s11, 1
      %p169 = scmp.lt.s32.totalorder %s16, 1
      %s170 = scalar_select %p169, %s16, 1
      %s171 = smul.addr %s170, 3
      %s172 = smul.addr %s171, 2
      %s173 = scalar_lea.vmem %s0, %s172
      %p174 = pneg %p37
      %p175 = pneg %p34
      %p176 = pneg %p58
      %p177 = pneg %p55
      %p178 = pneg %p79
      %p179 = pneg %p76
      %p180 = pneg %p100
      %p181 = pneg %p97
      %p182 = pneg %p126
      %p183 = pneg %p123
      %p184 = scmp.lt.s32.totalorder %s16, 1
      %s185 = scalar_select %p184, %s16, 1
      %s186 = smul.addr %s185, 6
      %s187 = smul.addr %s186, 8
      %s188 = scalar_lea.vmem %s4, %s187
      %p189 = scmp.lt.s32.totalorder %s16, 1
      %s190 = scalar_select %p189, %s16, 1
      %s191 = smul.addr %s190, 3
      %s192 = smul.addr %s191, 2
      %s193 = scalar_lea.vmem %s0, %s192
      %p194 = scmp.lt.s32.totalorder %s16, 1
      %s195 = scalar_select %p194, %s16, 1
      %s196 = smul.addr %s195, 6
      %s197 = smul.addr %s196, 8
      %s198 = scalar_lea.vmem %s4, %s197
      %v200 = vld [vmem:[%s193] sm:$0x3f]
      %v201 = vld [vmem:[%s1] sm:$0xf]
      %v202 = vld [vmem:[%s1 + $0x4] sm:$0xf]
      %s203 = scalar_lea.vmem %s1, 8
      %v204 = vld [vmem:[%s203] sm:$0xf]
      %v205 = vld [vmem:[%s203 + $0x4] sm:$0xf]
      %v208 = vunpack.c.l.b16 %v204
      %v209 = vunpack.c.l.b16 %v205
      %v210 = vpack.c.b16 %v209, %v208
      %v212 = vcombine.high %v200, %v200
      %v214 = vunpack.c.l.s4 1983009808
      %v215 = vunpack.c.0.s8 %v214
      %v216 = vlaneseq
      %v217 = vshrl.u32 %v216, 7
      %v218 = vsub.s32 %v215, %v217
      %v219 = vrot.slane %v200, %v218
      %v221 = vunpack.c.l.s4 1983009808
      %v222 = vunpack.c.0.s8 %v221
      %v223 = vlaneseq
      %v224 = vshrl.u32 %v223, 7
      %v225 = vsub.s32 %v222, %v224
      %v226 = vrot.slane %v212, %v225
      %v227 = vcombine.high %v219, %v219
      %228 = vrot.lane.b32.xlu0 %v219, 127
      %v229 = vpop.permute.xlu0 %228
      %230 = vrot.lane.b32.xlu0 %v227, 127
      %v231 = vpop.permute.xlu0 %230
      %232 = vrot.lane.b32.xlu0 %v226, 127
      %v233 = vpop.permute.xlu0 %232
      %vm234 = vcmask 1039360
      %v235 = vsel %vm234, %v229, %v231
      %v236 = vsel %vm234, %v231, %v233
      %vm237 = vcmask 31744
      %v239 = vsel %vm237, %v210, 0
      %vm241 = vcmask 1041408
      %v243 = vsel %vm241, %v235, 0
      %v246 = vsel %vm241, %v236, 0
      %v249 = vsel %vm241, %v233, 0
      %251 = vmatprep.subr.bf16.mxu0 %v246
      %252 = vmatpush1.bf16.msra.mxu0 %v243
      %253 = vmatprep.subr.bf16.mxu0 0
      %254 = vmatpush1.bf16.msra.mxu0 0
      %255 = vmatprep.subr.bf16.mxu0 0
      %256 = vmatpush1.bf16.msra.mxu0 0
      %257 = vmatprep.subr.bf16.mxu0 0
      %258 = vmatpush1.bf16.msra.mxu0 0
      %259 = vmatprep.subr.bf16.mxu0 0
      %260 = vmatpush1.bf16.msra.mxu0 0
      %261 = vmatprep.subr.bf16.mxu0 0
      %262 = vmatpush1.bf16.msra.mxu0 0
      %263 = vmatprep.subr.bf16.mxu0 0
      %264 = vmatpush1.bf16.msra.mxu0 0
      %265 = vmatprep.subr.bf16.mxu0 0
      %266 = vmatpush1.bf16.msra.mxu0 0
      %267 = vmatprep.subr.bf16.mxu0 0
      %268 = vmatpush1.bf16.msra.mxu0 0
      %269 = vmatprep.subr.bf16.mxu0 0
      %270 = vmatpush1.bf16.msra.mxu0 0
      %271 = vmatprep.subr.bf16.mxu0 0
      %272 = vmatpush1.bf16.msra.mxu0 0
      %273 = vmatprep.subr.bf16.mxu0 0
      %274 = vmatpush1.bf16.msra.mxu0 0
      %275 = vmatprep.subr.bf16.mxu0 0
      %276 = vmatpush1.bf16.msra.mxu0 0
      %277 = vmatprep.subr.bf16.mxu0 0
      %278 = vmatpush1.bf16.msra.mxu0 0
      %279 = vmatprep.subr.bf16.mxu0 0
      %280 = vmatpush1.bf16.msra.mxu0 0
      %281 = vmatprep.subr.bf16.mxu0 0
      %282 = vmatpush1.bf16.msra.mxu0 0
      %283 = vmatprep.mubr.bf16.mxu0 0
      %284 = vmatmul.mubr.bf16.gmra.mrb[0].mxu0 %v239
      %v285 = vpop.f32.mrb[0].mxu0
      %v286 = vadd.f32 0.0, %v285
      %v287 = vpop.f32.mrb[0].mxu0
      %v288 = vadd.f32 0.0, %v287
      %v289 = vpop.f32.mrb[0].mxu0
      %v290 = vadd.f32 0.0, %v289
      %v291 = vpop.f32.mrb[0].mxu0
      %v292 = vadd.f32 0.0, %v291
      %293 = vdwg.mxu0
      %294 = vmatprep.subr.bf16.mxu0 0
      %295 = vmatpush1.bf16.msra.mxu0 %v249
      %296 = vmatprep.subr.bf16.mxu0 0
      %297 = vmatpush1.bf16.msra.mxu0 0
      %298 = vmatprep.subr.bf16.mxu0 0
      %299 = vmatpush1.bf16.msra.mxu0 0
      %300 = vmatprep.subr.bf16.mxu0 0
      %301 = vmatpush1.bf16.msra.mxu0 0
      %302 = vmatprep.subr.bf16.mxu0 0
      %303 = vmatpush1.bf16.msra.mxu0 0
      %304 = vmatprep.subr.bf16.mxu0 0
      %305 = vmatpush1.bf16.msra.mxu0 0
      %306 = vmatprep.subr.bf16.mxu0 0
      %307 = vmatpush1.bf16.msra.mxu0 0
      %308 = vmatprep.subr.bf16.mxu0 0
      %309 = vmatpush1.bf16.msra.mxu0 0
      %310 = vmatprep.subr.bf16.mxu0 0
      %311 = vmatpush1.bf16.msra.mxu0 0
      %312 = vmatprep.subr.bf16.mxu0 0
      %313 = vmatpush1.bf16.msra.mxu0 0
      %314 = vmatprep.subr.bf16.mxu0 0
      %315 = vmatpush1.bf16.msra.mxu0 0
      %316 = vmatprep.subr.bf16.mxu0 0
      %317 = vmatpush1.bf16.msra.mxu0 0
      %318 = vmatprep.subr.bf16.mxu0 0
      %319 = vmatpush1.bf16.msra.mxu0 0
      %320 = vmatprep.subr.bf16.mxu0 0
      %321 = vmatpush1.bf16.msra.mxu0 0
      %322 = vmatprep.subr.bf16.mxu0 0
      %323 = vmatpush1.bf16.msra.mxu0 0
      %324 = vmatprep.subr.bf16.mxu0 0
      %325 = vmatpush1.bf16.msra.mxu0 0
      %326 = vmatprep.mubr.bf16.mxu0 0
      %327 = vmatmul.mubr.bf16.gmra.mrb[0].mxu0 %v239
      %v328 = vpop.f32.mrb[0].mxu0
      %v329 = vadd.f32 0.0, %v328
      %v330 = vpop.f32.mrb[0].mxu0
      %v331 = vpop.f32.mrb[0].mxu0
      %v332 = vadd.f32 0.0, %v331
      %v333 = vpop.f32.mrb[0].mxu0
      %334 = vdwg.mxu0
      %v337 = vunpack.c.l.b16 %v201
      %v338 = vunpack.c.l.b16 %v202
      %v339 = vpack.c.b16 %v338, %v337
      %v341 = vsel %vm237, %v339, 0
      %v344 = vsel %vm241, %v219, 0
      %v347 = vsel %vm241, %v227, 0
      %v350 = vsel %vm241, %v226, 0
      %352 = vmatprep.subr.bf16.mxu0 %v347
      %353 = vmatpush1.bf16.msra.mxu0 %v344
      %354 = vmatprep.subr.bf16.mxu0 0
      %355 = vmatpush1.bf16.msra.mxu0 0
      %356 = vmatprep.subr.bf16.mxu0 0
      %357 = vmatpush1.bf16.msra.mxu0 0
      %358 = vmatprep.subr.bf16.mxu0 0
      %359 = vmatpush1.bf16.msra.mxu0 0
      %360 = vmatprep.subr.bf16.mxu0 0
      %361 = vmatpush1.bf16.msra.mxu0 0
      %362 = vmatprep.subr.bf16.mxu0 0
      %363 = vmatpush1.bf16.msra.mxu0 0
      %364 = vmatprep.subr.bf16.mxu0 0
      %365 = vmatpush1.bf16.msra.mxu0 0
      %366 = vmatprep.subr.bf16.mxu0 0
      %367 = vmatpush1.bf16.msra.mxu0 0
      %368 = vmatprep.subr.bf16.mxu0 0
      %369 = vmatpush1.bf16.msra.mxu0 0
      %370 = vmatprep.subr.bf16.mxu0 0
      %371 = vmatpush1.bf16.msra.mxu0 0
      %372 = vmatprep.subr.bf16.mxu0 0
      %373 = vmatpush1.bf16.msra.mxu0 0
      %374 = vmatprep.subr.bf16.mxu0 0
      %375 = vmatpush1.bf16.msra.mxu0 0
      %376 = vmatprep.subr.bf16.mxu0 0
      %377 = vmatpush1.bf16.msra.mxu0 0
      %378 = vmatprep.subr.bf16.mxu0 0
      %379 = vmatpush1.bf16.msra.mxu0 0
      %380 = vmatprep.subr.bf16.mxu0 0
      %381 = vmatpush1.bf16.msra.mxu0 0
      %382 = vmatprep.subr.bf16.mxu0 0
      %383 = vmatpush1.bf16.msra.mxu0 0
      %384 = vmatprep.mubr.bf16.mxu0 0
      %385 = vmatmul.mubr.bf16.gmra.mrb[0].mxu0 %v341
      %v386 = vpop.f32.mrb[0].mxu0
      %v387 = vadd.f32 %v286, %v386
      %v388 = vpop.f32.mrb[0].mxu0
      %v389 = vadd.f32 %v288, %v388
      %v390 = vpop.f32.mrb[0].mxu0
      %v391 = vadd.f32 %v290, %v390
      %v392 = vpop.f32.mrb[0].mxu0
      %v393 = vadd.f32 %v292, %v392
      %394 = vdwg.mxu0
      %395 = vmatprep.subr.bf16.mxu0 0
      %396 = vmatpush1.bf16.msra.mxu0 %v350
      %397 = vmatprep.subr.bf16.mxu0 0
      %398 = vmatpush1.bf16.msra.mxu0 0
      %399 = vmatprep.subr.bf16.mxu0 0
      %400 = vmatpush1.bf16.msra.mxu0 0
      %401 = vmatprep.subr.bf16.mxu0 0
      %402 = vmatpush1.bf16.msra.mxu0 0
      %403 = vmatprep.subr.bf16.mxu0 0
      %404 = vmatpush1.bf16.msra.mxu0 0
      %405 = vmatprep.subr.bf16.mxu0 0
      %406 = vmatpush1.bf16.msra.mxu0 0
      %407 = vmatprep.subr.bf16.mxu0 0
      %408 = vmatpush1.bf16.msra.mxu0 0
      %409 = vmatprep.subr.bf16.mxu0 0
      %410 = vmatpush1.bf16.msra.mxu0 0
      %411 = vmatprep.subr.bf16.mxu0 0
      %412 = vmatpush1.bf16.msra.mxu0 0
      %413 = vmatprep.subr.bf16.mxu0 0
      %414 = vmatpush1.bf16.msra.mxu0 0
      %415 = vmatprep.subr.bf16.mxu0 0
      %416 = vmatpush1.bf16.msra.mxu0 0
      %417 = vmatprep.subr.bf16.mxu0 0
      %418 = vmatpush1.bf16.msra.mxu0 0
      %419 = vmatprep.subr.bf16.mxu0 0
      %420 = vmatpush1.bf16.msra.mxu0 0
      %421 = vmatprep.subr.bf16.mxu0 0
      %422 = vmatpush1.bf16.msra.mxu0 0
      %423 = vmatprep.subr.bf16.mxu0 0
      %424 = vmatpush1.bf16.msra.mxu0 0
      %425 = vmatprep.subr.bf16.mxu0 0
      %426 = vmatpush1.bf16.msra.mxu0 0
      %427 = vmatprep.mubr.bf16.mxu0 0
      %428 = vmatmul.mubr.bf16.gmra.mrb[0].mxu0 %v341
      %v429 = vpop.f32.mrb[0].mxu0
      %v430 = vadd.f32 %v329, %v429
      %v431 = vpop.f32.mrb[0].mxu0
      %v432 = vpop.f32.mrb[0].mxu0
      %v433 = vadd.f32 %v332, %v432
      %v434 = vpop.f32.mrb[0].mxu0
      %435 = vdwg.mxu0
      %v436 = vld [vmem:[%s193] sm:$0x3f]
      %s437 = scalar_lea.vmem %s1, 16
      %v438 = vld [vmem:[%s437] sm:$0xf]
      %v439 = vld [vmem:[%s437 + $0x4] sm:$0xf]
      %v442 = vunpack.c.l.b16 %v438
      %v443 = vunpack.c.l.b16 %v439
      %v444 = vpack.c.b16 %v443, %v442
      %v446 = vcombine.high %v436, %v436
      %v448 = vunpack.c.l.s4 1983009808
      %v449 = vunpack.c.0.s8 %v448
      %v450 = vlaneseq
      %v451 = vshrl.u32 %v450, 7
      %v452 = vsub.s32 %v449, %v451
      %v453 = vrot.slane %v436, %v452
      %v455 = vunpack.c.l.s4 1983009808
      %v456 = vunpack.c.0.s8 %v455
      %v457 = vlaneseq
      %v458 = vshrl.u32 %v457, 7
      %v459 = vsub.s32 %v456, %v458
      %v460 = vrot.slane %v446, %v459
      %v461 = vcombine.high %v453, %v453
      %462 = vrot.lane.b32.xlu0 %v453, 126
      %v463 = vpop.permute.xlu0 %462
      %464 = vrot.lane.b32.xlu0 %v461, 126
      %v465 = vpop.permute.xlu0 %464
      %466 = vrot.lane.b32.xlu0 %v460, 126
      %v467 = vpop.permute.xlu0 %466
      %vm468 = vcmask 1031168
      %v469 = vsel %vm468, %v463, %v465
      %v470 = vsel %vm468, %v465, %v467
      %v472 = vsel %vm237, %v444, 0
      %v475 = vsel %vm241, %v469, 0
      %v478 = vsel %vm241, %v470, 0
      %v481 = vsel %vm241, %v467, 0
      %483 = vmatprep.subr.bf16.mxu0 %v478
      %484 = vmatpush1.bf16.msra.mxu0 %v475
      %485 = vmatprep.subr.bf16.mxu0 0
      %486 = vmatpush1.bf16.msra.mxu0 0
      %487 = vmatprep.subr.bf16.mxu0 0
      %488 = vmatpush1.bf16.msra.mxu0 0
      %489 = vmatprep.subr.bf16.mxu0 0
      %490 = vmatpush1.bf16.msra.mxu0 0
      %491 = vmatprep.subr.bf16.mxu0 0
      %492 = vmatpush1.bf16.msra.mxu0 0
      %493 = vmatprep.subr.bf16.mxu0 0
      %494 = vmatpush1.bf16.msra.mxu0 0
      %495 = vmatprep.subr.bf16.mxu0 0
      %496 = vmatpush1.bf16.msra.mxu0 0
      %497 = vmatprep.subr.bf16.mxu0 0
      %498 = vmatpush1.bf16.msra.mxu0 0
      %499 = vmatprep.subr.bf16.mxu0 0
      %500 = vmatpush1.bf16.msra.mxu0 0
      %501 = vmatprep.subr.bf16.mxu0 0
      %502 = vmatpush1.bf16.msra.mxu0 0
      %503 = vmatprep.subr.bf16.mxu0 0
      %504 = vmatpush1.bf16.msra.mxu0 0
      %505 = vmatprep.subr.bf16.mxu0 0
      %506 = vmatpush1.bf16.msra.mxu0 0
      %507 = vmatprep.subr.bf16.mxu0 0
      %508 = vmatpush1.bf16.msra.mxu0 0
      %509 = vmatprep.subr.bf16.mxu0 0
      %510 = vmatpush1.bf16.msra.mxu0 0
      %511 = vmatprep.subr.bf16.mxu0 0
      %512 = vmatpush1.bf16.msra.mxu0 0
      %513 = vmatprep.subr.bf16.mxu0 0
      %514 = vmatpush1.bf16.msra.mxu0 0
      %515 = vmatprep.mubr.bf16.mxu0 0
      %516 = vmatmul.mubr.bf16.gmra.mrb[0].mxu0 %v472
      %v517 = vpop.f32.mrb[0].mxu0
      %v518 = vadd.f32 0.0, %v517
      %v519 = vpop.f32.mrb[0].mxu0
      %v520 = vadd.f32 0.0, %v519
      %v521 = vpop.f32.mrb[0].mxu0
      %v522 = vadd.f32 0.0, %v521
      %v523 = vpop.f32.mrb[0].mxu0
      %v524 = vadd.f32 0.0, %v523
      %525 = vdwg.mxu0
      %526 = vmatprep.subr.bf16.mxu0 0
      %527 = vmatpush1.bf16.msra.mxu0 %v481
      %528 = vmatprep.subr.bf16.mxu0 0
      %529 = vmatpush1.bf16.msra.mxu0 0
      %530 = vmatprep.subr.bf16.mxu0 0
      %531 = vmatpush1.bf16.msra.mxu0 0
      %532 = vmatprep.subr.bf16.mxu0 0
      %533 = vmatpush1.bf16.msra.mxu0 0
      %534 = vmatprep.subr.bf16.mxu0 0
      %535 = vmatpush1.bf16.msra.mxu0 0
      %536 = vmatprep.subr.bf16.mxu0 0
      %537 = vmatpush1.bf16.msra.mxu0 0
      %538 = vmatprep.subr.bf16.mxu0 0
      %539 = vmatpush1.bf16.msra.mxu0 0
      %540 = vmatprep.subr.bf16.mxu0 0
      %541 = vmatpush1.bf16.msra.mxu0 0
      %542 = vmatprep.subr.bf16.mxu0 0
      %543 = vmatpush1.bf16.msra.mxu0 0
      %544 = vmatprep.subr.bf16.mxu0 0
      %545 = vmatpush1.bf16.msra.mxu0 0
      %546 = vmatprep.subr.bf16.mxu0 0
      %547 = vmatpush1.bf16.msra.mxu0 0
      %548 = vmatprep.subr.bf16.mxu0 0
      %549 = vmatpush1.bf16.msra.mxu0 0
      %550 = vmatprep.subr.bf16.mxu0 0
      %551 = vmatpush1.bf16.msra.mxu0 0
      %552 = vmatprep.subr.bf16.mxu0 0
      %553 = vmatpush1.bf16.msra.mxu0 0
      %554 = vmatprep.subr.bf16.mxu0 0
      %555 = vmatpush1.bf16.msra.mxu0 0
      %556 = vmatprep.subr.bf16.mxu0 0
      %557 = vmatpush1.bf16.msra.mxu0 0
      %558 = vmatprep.mubr.bf16.mxu0 0
      %559 = vmatmul.mubr.bf16.gmra.mrb[0].mxu0 %v472
      %v560 = vpop.f32.mrb[0].mxu0
      %v561 = vadd.f32 0.0, %v560
      %v562 = vpop.f32.mrb[0].mxu0
      %v563 = vpop.f32.mrb[0].mxu0
      %v564 = vadd.f32 0.0, %v563
      %v565 = vpop.f32.mrb[0].mxu0
      %566 = vdwg.mxu0
      %v567 = vadd.f32 %v387, %v518
      %v568 = vadd.f32 %v389, %v520
      %v569 = vadd.f32 %v430, %v561
      %v570 = vadd.f32 %v391, %v522
      %v571 = vadd.f32 %v393, %v524
      %v572 = vadd.f32 %v433, %v564
      %v573 = vld [vmem:[%s193] sm:$0x3f]
      %s574 = scalar_lea.vmem %s1, 24
      %v575 = vld [vmem:[%s574] sm:$0xf]
      %v576 = vld [vmem:[%s574 + $0x4] sm:$0xf]
      %v579 = vunpack.c.l.b16 %v575
      %v580 = vunpack.c.l.b16 %v576
      %v581 = vpack.c.b16 %v580, %v579
      %v583 = vcombine.high %v573, %v573
      %v585 = vunpack.c.l.s4 1983009808
      %v586 = vunpack.c.0.s8 %v585
      %v587 = vlaneseq
      %v588 = vshrl.u32 %v587, 7
      %v589 = vsub.s32 %v586, %v588
      %v590 = vrot.slane %v573, %v589
      %v592 = vunpack.c.l.s4 1983009808
      %v593 = vunpack.c.0.s8 %v592
      %v594 = vlaneseq
      %v595 = vshrl.u32 %v594, 7
      %v596 = vsub.s32 %v593, %v595
      %v597 = vrot.slane %v583, %v596
      %v598 = vcombine.high %v590, %v590
      %599 = vrot.lane.b32.xlu0 %v590, 110
      %v600 = vpop.permute.xlu0 %599
      %601 = vrot.lane.b32.xlu0 %v598, 110
      %v602 = vpop.permute.xlu0 %601
      %603 = vrot.lane.b32.xlu0 %v597, 110
      %v604 = vpop.permute.xlu0 %603
      %vm605 = vcmask 900096
      %v606 = vsel %vm605, %v600, %v602
      %v607 = vsel %vm605, %v602, %v604
      %v609 = vsel %vm237, %v581, 0
      %v612 = vsel %vm241, %v606, 0
      %v615 = vsel %vm241, %v607, 0
      %v618 = vsel %vm241, %v604, 0
      %620 = vmatprep.subr.bf16.mxu0 %v615
      %621 = vmatpush1.bf16.msra.mxu0 %v612
      %622 = vmatprep.subr.bf16.mxu0 0
      %623 = vmatpush1.bf16.msra.mxu0 0
      %624 = vmatprep.subr.bf16.mxu0 0
      %625 = vmatpush1.bf16.msra.mxu0 0
      %626 = vmatprep.subr.bf16.mxu0 0
      %627 = vmatpush1.bf16.msra.mxu0 0
      %628 = vmatprep.subr.bf16.mxu0 0
      %629 = vmatpush1.bf16.msra.mxu0 0
      %630 = vmatprep.subr.bf16.mxu0 0
      %631 = vmatpush1.bf16.msra.mxu0 0
      %632 = vmatprep.subr.bf16.mxu0 0
      %633 = vmatpush1.bf16.msra.mxu0 0
      %634 = vmatprep.subr.bf16.mxu0 0
      %635 = vmatpush1.bf16.msra.mxu0 0
      %636 = vmatprep.subr.bf16.mxu0 0
      %637 = vmatpush1.bf16.msra.mxu0 0
      %638 = vmatprep.subr.bf16.mxu0 0
      %639 = vmatpush1.bf16.msra.mxu0 0
      %640 = vmatprep.subr.bf16.mxu0 0
      %641 = vmatpush1.bf16.msra.mxu0 0
      %642 = vmatprep.subr.bf16.mxu0 0
      %643 = vmatpush1.bf16.msra.mxu0 0
      %644 = vmatprep.subr.bf16.mxu0 0
      %645 = vmatpush1.bf16.msra.mxu0 0
      %646 = vmatprep.subr.bf16.mxu0 0
      %647 = vmatpush1.bf16.msra.mxu0 0
      %648 = vmatprep.subr.bf16.mxu0 0
      %649 = vmatpush1.bf16.msra.mxu0 0
      %650 = vmatprep.subr.bf16.mxu0 0
      %651 = vmatpush1.bf16.msra.mxu0 0
      %652 = vmatprep.mubr.bf16.mxu0 0
      %653 = vmatmul.mubr.bf16.gmra.mrb[0].mxu0 %v609
      %v654 = vpop.f32.mrb[0].mxu0
      %v655 = vadd.f32 0.0, %v654
      %v656 = vpop.f32.mrb[0].mxu0
      %v657 = vadd.f32 0.0, %v656
      %v658 = vpop.f32.mrb[0].mxu0
      %v659 = vadd.f32 0.0, %v658
      %v660 = vpop.f32.mrb[0].mxu0
      %v661 = vadd.f32 0.0, %v660
      %662 = vdwg.mxu0
      %663 = vmatprep.subr.bf16.mxu0 0
      %664 = vmatpush1.bf16.msra.mxu0 %v618
      %665 = vmatprep.subr.bf16.mxu0 0
      %666 = vmatpush1.bf16.msra.mxu0 0
      %667 = vmatprep.subr.bf16.mxu0 0
      %668 = vmatpush1.bf16.msra.mxu0 0
      %669 = vmatprep.subr.bf16.mxu0 0
      %670 = vmatpush1.bf16.msra.mxu0 0
      %671 = vmatprep.subr.bf16.mxu0 0
      %672 = vmatpush1.bf16.msra.mxu0 0
      %673 = vmatprep.subr.bf16.mxu0 0
      %674 = vmatpush1.bf16.msra.mxu0 0
      %675 = vmatprep.subr.bf16.mxu0 0
      %676 = vmatpush1.bf16.msra.mxu0 0
      %677 = vmatprep.subr.bf16.mxu0 0
      %678 = vmatpush1.bf16.msra.mxu0 0
      %679 = vmatprep.subr.bf16.mxu0 0
      %680 = vmatpush1.bf16.msra.mxu0 0
      %681 = vmatprep.subr.bf16.mxu0 0
      %682 = vmatpush1.bf16.msra.mxu0 0
      %683 = vmatprep.subr.bf16.mxu0 0
      %684 = vmatpush1.bf16.msra.mxu0 0
      %685 = vmatprep.subr.bf16.mxu0 0
      %686 = vmatpush1.bf16.msra.mxu0 0
      %687 = vmatprep.subr.bf16.mxu0 0
      %688 = vmatpush1.bf16.msra.mxu0 0
      %689 = vmatprep.subr.bf16.mxu0 0
      %690 = vmatpush1.bf16.msra.mxu0 0
      %691 = vmatprep.subr.bf16.mxu0 0
      %692 = vmatpush1.bf16.msra.mxu0 0
      %693 = vmatprep.subr.bf16.mxu0 0
      %694 = vmatpush1.bf16.msra.mxu0 0
      %695 = vmatprep.mubr.bf16.mxu0 0
      %696 = vmatmul.mubr.bf16.gmra.mrb[0].mxu0 %v609
      %v697 = vpop.f32.mrb[0].mxu0
      %v698 = vadd.f32 0.0, %v697
      %v699 = vpop.f32.mrb[0].mxu0
      %v700 = vpop.f32.mrb[0].mxu0
      %v701 = vadd.f32 0.0, %v700
      %v702 = vpop.f32.mrb[0].mxu0
      %703 = vdwg.mxu0
      %v704 = vadd.f32 %v567, %v655
      %v705 = vadd.f32 %v568, %v657
      %v706 = vadd.f32 %v569, %v698
      %v707 = vadd.f32 %v570, %v659
      %v708 = vadd.f32 %v571, %v661
      %v709 = vadd.f32 %v572, %v701
      %v710 = vld [vmem:[%s193] sm:$0x3f]
      %s711 = scalar_lea.vmem %s1, 32
      %v712 = vld [vmem:[%s711] sm:$0xf]
      %v713 = vld [vmem:[%s711 + $0x4] sm:$0xf]
      %v716 = vunpack.c.l.b16 %v712
      %v717 = vunpack.c.l.b16 %v713
      %v718 = vpack.c.b16 %v717, %v716
      %v720 = vcombine.high %v710, %v710
      %v722 = vunpack.c.l.s4 1983009808
      %v723 = vunpack.c.0.s8 %v722
      %v724 = vlaneseq
      %v725 = vshrl.u32 %v724, 7
      %v726 = vsub.s32 %v723, %v725
      %v727 = vrot.slane %v710, %v726
      %v729 = vunpack.c.l.s4 1983009808
      %v730 = vunpack.c.0.s8 %v729
      %v731 = vlaneseq
      %v732 = vshrl.u32 %v731, 7
      %v733 = vsub.s32 %v730, %v732
      %v734 = vrot.slane %v720, %v733
      %v735 = vcombine.high %v727, %v727
      %736 = vrot.lane.b32.xlu0 %v727, 109
      %v737 = vpop.permute.xlu0 %736
      %738 = vrot.lane.b32.xlu0 %v735, 109
      %v739 = vpop.permute.xlu0 %738
      %740 = vrot.lane.b32.xlu0 %v734, 109
      %v741 = vpop.permute.xlu0 %740
      %vm742 = vcmask 891904
      %v743 = vsel %vm742, %v737, %v739
      %v744 = vsel %vm742, %v739, %v741
      %v746 = vsel %vm237, %v718, 0
      %v749 = vsel %vm241, %v743, 0
      %v752 = vsel %vm241, %v744, 0
      %v755 = vsel %vm241, %v741, 0
      %757 = vmatprep.subr.bf16.mxu0 %v752
      %758 = vmatpush1.bf16.msra.mxu0 %v749
      %759 = vmatprep.subr.bf16.mxu0 0
      %760 = vmatpush1.bf16.msra.mxu0 0
      %761 = vmatprep.subr.bf16.mxu0 0
      %762 = vmatpush1.bf16.msra.mxu0 0
      %763 = vmatprep.subr.bf16.mxu0 0
      %764 = vmatpush1.bf16.msra.mxu0 0
      %765 = vmatprep.subr.bf16.mxu0 0
      %766 = vmatpush1.bf16.msra.mxu0 0
      %767 = vmatprep.subr.bf16.mxu0 0
      %768 = vmatpush1.bf16.msra.mxu0 0
      %769 = vmatprep.subr.bf16.mxu0 0
      %770 = vmatpush1.bf16.msra.mxu0 0
      %771 = vmatprep.subr.bf16.mxu0 0
      %772 = vmatpush1.bf16.msra.mxu0 0
      %773 = vmatprep.subr.bf16.mxu0 0
      %774 = vmatpush1.bf16.msra.mxu0 0
      %775 = vmatprep.subr.bf16.mxu0 0
      %776 = vmatpush1.bf16.msra.mxu0 0
      %777 = vmatprep.subr.bf16.mxu0 0
      %778 = vmatpush1.bf16.msra.mxu0 0
      %779 = vmatprep.subr.bf16.mxu0 0
      %780 = vmatpush1.bf16.msra.mxu0 0
      %781 = vmatprep.subr.bf16.mxu0 0
      %782 = vmatpush1.bf16.msra.mxu0 0
      %783 = vmatprep.subr.bf16.mxu0 0
      %784 = vmatpush1.bf16.msra.mxu0 0
      %785 = vmatprep.subr.bf16.mxu0 0
      %786 = vmatpush1.bf16.msra.mxu0 0
      %787 = vmatprep.subr.bf16.mxu0 0
      %788 = vmatpush1.bf16.msra.mxu0 0
      %789 = vmatprep.mubr.bf16.mxu0 0
      %790 = vmatmul.mubr.bf16.gmra.mrb[0].mxu0 %v746
      %v791 = vpop.f32.mrb[0].mxu0
      %v792 = vadd.f32 0.0, %v791
      %v793 = vpop.f32.mrb[0].mxu0
      %v794 = vadd.f32 0.0, %v793
      %v795 = vpop.f32.mrb[0].mxu0
      %v796 = vadd.f32 0.0, %v795
      %v797 = vpop.f32.mrb[0].mxu0
      %v798 = vadd.f32 0.0, %v797
      %799 = vdwg.mxu0
      %800 = vmatprep.subr.bf16.mxu0 0
      %801 = vmatpush1.bf16.msra.mxu0 %v755
      %802 = vmatprep.subr.bf16.mxu0 0
      %803 = vmatpush1.bf16.msra.mxu0 0
      %804 = vmatprep.subr.bf16.mxu0 0
      %805 = vmatpush1.bf16.msra.mxu0 0
      %806 = vmatprep.subr.bf16.mxu0 0
      %807 = vmatpush1.bf16.msra.mxu0 0
      %808 = vmatprep.subr.bf16.mxu0 0
      %809 = vmatpush1.bf16.msra.mxu0 0
      %810 = vmatprep.subr.bf16.mxu0 0
      %811 = vmatpush1.bf16.msra.mxu0 0
      %812 = vmatprep.subr.bf16.mxu0 0
      %813 = vmatpush1.bf16.msra.mxu0 0
      %814 = vmatprep.subr.bf16.mxu0 0
      %815 = vmatpush1.bf16.msra.mxu0 0
      %816 = vmatprep.subr.bf16.mxu0 0
      %817 = vmatpush1.bf16.msra.mxu0 0
      %818 = vmatprep.subr.bf16.mxu0 0
      %819 = vmatpush1.bf16.msra.mxu0 0
      %820 = vmatprep.subr.bf16.mxu0 0
      %821 = vmatpush1.bf16.msra.mxu0 0
      %822 = vmatprep.subr.bf16.mxu0 0
      %823 = vmatpush1.bf16.msra.mxu0 0
      %824 = vmatprep.subr.bf16.mxu0 0
      %825 = vmatpush1.bf16.msra.mxu0 0
      %826 = vmatprep.subr.bf16.mxu0 0
      %827 = vmatpush1.bf16.msra.mxu0 0
      %828 = vmatprep.subr.bf16.mxu0 0
      %829 = vmatpush1.bf16.msra.mxu0 0
      %830 = vmatprep.subr.bf16.mxu0 0
      %831 = vmatpush1.bf16.msra.mxu0 0
      %832 = vmatprep.mubr.bf16.mxu0 0
      %833 = vmatmul.mubr.bf16.gmra.mrb[0].mxu0 %v746
      %v834 = vpop.f32.mrb[0].mxu0
      %v835 = vadd.f32 0.0, %v834
      %v836 = vpop.f32.mrb[0].mxu0
      %v837 = vpop.f32.mrb[0].mxu0
      %v838 = vadd.f32 0.0, %v837
      %v839 = vpop.f32.mrb[0].mxu0
      %840 = vdwg.mxu0
      %v841 = vadd.f32 %v704, %v792
      %v842 = vadd.f32 %v705, %v794
      %v843 = vadd.f32 %v706, %v835
      %v844 = vadd.f32 %v707, %v796
      %v845 = vadd.f32 %v708, %v798
      %v846 = vadd.f32 %v709, %v838
      %v847 = vld [vmem:[%s193] sm:$0x3f]
      %s848 = scalar_lea.vmem %s1, 40
      %v849 = vld [vmem:[%s848] sm:$0xf]
      %v850 = vld [vmem:[%s848 + $0x4] sm:$0xf]
      %v853 = vunpack.c.l.b16 %v849
      %v854 = vunpack.c.l.b16 %v850
      %v855 = vpack.c.b16 %v854, %v853
      %v857 = vcombine.high %v847, %v847
      %v859 = vunpack.c.l.s4 1983009808
      %v860 = vunpack.c.0.s8 %v859
      %v861 = vlaneseq
      %v862 = vshrl.u32 %v861, 7
      %v863 = vsub.s32 %v860, %v862
      %v864 = vrot.slane %v847, %v863
      %v866 = vunpack.c.l.s4 1983009808
      %v867 = vunpack.c.0.s8 %v866
      %v868 = vlaneseq
      %v869 = vshrl.u32 %v868, 7
      %v870 = vsub.s32 %v867, %v869
      %v871 = vrot.slane %v857, %v870
      %v872 = vcombine.high %v864, %v864
      %873 = vrot.lane.b32.xlu0 %v864, 108
      %v874 = vpop.permute.xlu0 %873
      %875 = vrot.lane.b32.xlu0 %v872, 108
      %v876 = vpop.permute.xlu0 %875
      %877 = vrot.lane.b32.xlu0 %v871, 108
      %v878 = vpop.permute.xlu0 %877
      %vm879 = vcmask 883712
      %v880 = vsel %vm879, %v874, %v876
      %v881 = vsel %vm879, %v876, %v878
      %v883 = vsel %vm237, %v855, 0
      %v886 = vsel %vm241, %v880, 0
      %v889 = vsel %vm241, %v881, 0
      %v892 = vsel %vm241, %v878, 0
      %894 = vmatprep.subr.bf16.mxu0 %v889
      %895 = vmatpush1.bf16.msra.mxu0 %v886
      %896 = vmatprep.subr.bf16.mxu0 0
      %897 = vmatpush1.bf16.msra.mxu0 0
      %898 = vmatprep.subr.bf16.mxu0 0
      %899 = vmatpush1.bf16.msra.mxu0 0
      %900 = vmatprep.subr.bf16.mxu0 0
      %901 = vmatpush1.bf16.msra.mxu0 0
      %902 = vmatprep.subr.bf16.mxu0 0
      %903 = vmatpush1.bf16.msra.mxu0 0
      %904 = vmatprep.subr.bf16.mxu0 0
      %905 = vmatpush1.bf16.msra.mxu0 0
      %906 = vmatprep.subr.bf16.mxu0 0
      %907 = vmatpush1.bf16.msra.mxu0 0
      %908 = vmatprep.subr.bf16.mxu0 0
      %909 = vmatpush1.bf16.msra.mxu0 0
      %910 = vmatprep.subr.bf16.mxu0 0
      %911 = vmatpush1.bf16.msra.mxu0 0
      %912 = vmatprep.subr.bf16.mxu0 0
      %913 = vmatpush1.bf16.msra.mxu0 0
      %914 = vmatprep.subr.bf16.mxu0 0
      %915 = vmatpush1.bf16.msra.mxu0 0
      %916 = vmatprep.subr.bf16.mxu0 0
      %917 = vmatpush1.bf16.msra.mxu0 0
      %918 = vmatprep.subr.bf16.mxu0 0
      %919 = vmatpush1.bf16.msra.mxu0 0
      %920 = vmatprep.subr.bf16.mxu0 0
      %921 = vmatpush1.bf16.msra.mxu0 0
      %922 = vmatprep.subr.bf16.mxu0 0
      %923 = vmatpush1.bf16.msra.mxu0 0
      %924 = vmatprep.subr.bf16.mxu0 0
      %925 = vmatpush1.bf16.msra.mxu0 0
      %926 = vmatprep.mubr.bf16.mxu0 0
      %927 = vmatmul.mubr.bf16.gmra.mrb[0].mxu0 %v883
      %v928 = vpop.f32.mrb[0].mxu0
      %v929 = vadd.f32 0.0, %v928
      %v930 = vpop.f32.mrb[0].mxu0
      %v931 = vadd.f32 0.0, %v930
      %v932 = vpop.f32.mrb[0].mxu0
      %v933 = vadd.f32 0.0, %v932
      %v934 = vpop.f32.mrb[0].mxu0
      %v935 = vadd.f32 0.0, %v934
      %936 = vdwg.mxu0
      %937 = vmatprep.subr.bf16.mxu0 0
      %938 = vmatpush1.bf16.msra.mxu0 %v892
      %939 = vmatprep.subr.bf16.mxu0 0
      %940 = vmatpush1.bf16.msra.mxu0 0
      %941 = vmatprep.subr.bf16.mxu0 0
      %942 = vmatpush1.bf16.msra.mxu0 0
      %943 = vmatprep.subr.bf16.mxu0 0
      %944 = vmatpush1.bf16.msra.mxu0 0
      %945 = vmatprep.subr.bf16.mxu0 0
      %946 = vmatpush1.bf16.msra.mxu0 0
      %947 = vmatprep.subr.bf16.mxu0 0
      %948 = vmatpush1.bf16.msra.mxu0 0
      %949 = vmatprep.subr.bf16.mxu0 0
      %950 = vmatpush1.bf16.msra.mxu0 0
      %951 = vmatprep.subr.bf16.mxu0 0
      %952 = vmatpush1.bf16.msra.mxu0 0
      %953 = vmatprep.subr.bf16.mxu0 0
      %954 = vmatpush1.bf16.msra.mxu0 0
      %955 = vmatprep.subr.bf16.mxu0 0
      %956 = vmatpush1.bf16.msra.mxu0 0
      %957 = vmatprep.subr.bf16.mxu0 0
      %958 = vmatpush1.bf16.msra.mxu0 0
      %959 = vmatprep.subr.bf16.mxu0 0
      %960 = vmatpush1.bf16.msra.mxu0 0
      %961 = vmatprep.subr.bf16.mxu0 0
      %962 = vmatpush1.bf16.msra.mxu0 0
      %963 = vmatprep.subr.bf16.mxu0 0
      %964 = vmatpush1.bf16.msra.mxu0 0
      %965 = vmatprep.subr.bf16.mxu0 0
      %966 = vmatpush1.bf16.msra.mxu0 0
      %967 = vmatprep.subr.bf16.mxu0 0
      %968 = vmatpush1.bf16.msra.mxu0 0
      %969 = vmatprep.mubr.bf16.mxu0 0
      %970 = vmatmul.mubr.bf16.gmra.mrb[0].mxu0 %v883
      %v971 = vpop.f32.mrb[0].mxu0
      %v972 = vadd.f32 0.0, %v971
      %v973 = vpop.f32.mrb[0].mxu0
      %v974 = vpop.f32.mrb[0].mxu0
      %v975 = vadd.f32 0.0, %v974
      %v976 = vpop.f32.mrb[0].mxu0
      %977 = vdwg.mxu0
      %v978 = vadd.f32 %v841, %v929
      %v979 = vadd.f32 %v842, %v931
      %v980 = vadd.f32 %v843, %v972
      %v981 = vadd.f32 %v844, %v933
      %v982 = vadd.f32 %v845, %v935
      %v983 = vadd.f32 %v846, %v975
      %v984 = vld [vmem:[%s193] sm:$0x3f]
      %s985 = scalar_lea.vmem %s1, 48
      %v986 = vld [vmem:[%s985] sm:$0xf]
      %v987 = vld [vmem:[%s985 + $0x4] sm:$0xf]
      %v990 = vunpack.c.l.b16 %v986
      %v991 = vunpack.c.l.b16 %v987
      %v992 = vpack.c.b16 %v991, %v990
      %v994 = vcombine.high %v984, %v984
      %v996 = vunpack.c.l.s4 1983009808
      %v997 = vunpack.c.0.s8 %v996
      %v998 = vlaneseq
      %v999 = vshrl.u32 %v998, 7
      %v1000 = vsub.s32 %v997, %v999
      %v1001 = vrot.slane %v984, %v1000
      %v1003 = vunpack.c.l.s4 1983009808
      %v1004 = vunpack.c.0.s8 %v1003
      %v1005 = vlaneseq
      %v1006 = vshrl.u32 %v1005, 7
      %v1007 = vsub.s32 %v1004, %v1006
      %v1008 = vrot.slane %v994, %v1007
      %v1009 = vcombine.high %v1001, %v1001
      %1010 = vrot.lane.b32.xlu0 %v1001, 92
      %v1011 = vpop.permute.xlu0 %1010
      %1012 = vrot.lane.b32.xlu0 %v1009, 92
      %v1013 = vpop.permute.xlu0 %1012
      %1014 = vrot.lane.b32.xlu0 %v1008, 92
      %v1015 = vpop.permute.xlu0 %1014
      %vm1016 = vcmask 752640
      %v1017 = vsel %vm1016, %v1011, %v1013
      %v1018 = vsel %vm1016, %v1013, %v1015
      %v1020 = vsel %vm237, %v992, 0
      %v1023 = vsel %vm241, %v1017, 0
      %v1026 = vsel %vm241, %v1018, 0
      %v1029 = vsel %vm241, %v1015, 0
      %1031 = vmatprep.subr.bf16.mxu0 %v1026
      %1032 = vmatpush1.bf16.msra.mxu0 %v1023
      %1033 = vmatprep.subr.bf16.mxu0 0
      %1034 = vmatpush1.bf16.msra.mxu0 0
      %1035 = vmatprep.subr.bf16.mxu0 0
      %1036 = vmatpush1.bf16.msra.mxu0 0
      %1037 = vmatprep.subr.bf16.mxu0 0
      %1038 = vmatpush1.bf16.msra.mxu0 0
      %1039 = vmatprep.subr.bf16.mxu0 0
      %1040 = vmatpush1.bf16.msra.mxu0 0
      %1041 = vmatprep.subr.bf16.mxu0 0
      %1042 = vmatpush1.bf16.msra.mxu0 0
      %1043 = vmatprep.subr.bf16.mxu0 0
      %1044 = vmatpush1.bf16.msra.mxu0 0
      %1045 = vmatprep.subr.bf16.mxu0 0
      %1046 = vmatpush1.bf16.msra.mxu0 0
      %1047 = vmatprep.subr.bf16.mxu0 0
      %1048 = vmatpush1.bf16.msra.mxu0 0
      %1049 = vmatprep.subr.bf16.mxu0 0
      %1050 = vmatpush1.bf16.msra.mxu0 0
      %1051 = vmatprep.subr.bf16.mxu0 0
      %1052 = vmatpush1.bf16.msra.mxu0 0
      %1053 = vmatprep.subr.bf16.mxu0 0
      %1054 = vmatpush1.bf16.msra.mxu0 0
      %1055 = vmatprep.subr.bf16.mxu0 0
      %1056 = vmatpush1.bf16.msra.mxu0 0
      %1057 = vmatprep.subr.bf16.mxu0 0
      %1058 = vmatpush1.bf16.msra.mxu0 0
      %1059 = vmatprep.subr.bf16.mxu0 0
      %1060 = vmatpush1.bf16.msra.mxu0 0
      %1061 = vmatprep.subr.bf16.mxu0 0
      %1062 = vmatpush1.bf16.msra.mxu0 0
      %1063 = vmatprep.mubr.bf16.mxu0 0
      %1064 = vmatmul.mubr.bf16.gmra.mrb[0].mxu0 %v1020
      %v1065 = vpop.f32.mrb[0].mxu0
      %v1066 = vadd.f32 0.0, %v1065
      %v1067 = vpop.f32.mrb[0].mxu0
      %v1068 = vadd.f32 0.0, %v1067
      %v1069 = vpop.f32.mrb[0].mxu0
      %v1070 = vadd.f32 0.0, %v1069
      %v1071 = vpop.f32.mrb[0].mxu0
      %v1072 = vadd.f32 0.0, %v1071
      %1073 = vdwg.mxu0
      %1074 = vmatprep.subr.bf16.mxu0 0
      %1075 = vmatpush1.bf16.msra.mxu0 %v1029
      %1076 = vmatprep.subr.bf16.mxu0 0
      %1077 = vmatpush1.bf16.msra.mxu0 0
      %1078 = vmatprep.subr.bf16.mxu0 0
      %1079 = vmatpush1.bf16.msra.mxu0 0
      %1080 = vmatprep.subr.bf16.mxu0 0
      %1081 = vmatpush1.bf16.msra.mxu0 0
      %1082 = vmatprep.subr.bf16.mxu0 0
      %1083 = vmatpush1.bf16.msra.mxu0 0
      %1084 = vmatprep.subr.bf16.mxu0 0
      %1085 = vmatpush1.bf16.msra.mxu0 0
      %1086 = vmatprep.subr.bf16.mxu0 0
      %1087 = vmatpush1.bf16.msra.mxu0 0
      %1088 = vmatprep.subr.bf16.mxu0 0
      %1089 = vmatpush1.bf16.msra.mxu0 0
      %1090 = vmatprep.subr.bf16.mxu0 0
      %1091 = vmatpush1.bf16.msra.mxu0 0
      %1092 = vmatprep.subr.bf16.mxu0 0
      %1093 = vmatpush1.bf16.msra.mxu0 0
      %1094 = vmatprep.subr.bf16.mxu0 0
      %1095 = vmatpush1.bf16.msra.mxu0 0
      %1096 = vmatprep.subr.bf16.mxu0 0
      %1097 = vmatpush1.bf16.msra.mxu0 0
      %1098 = vmatprep.subr.bf16.mxu0 0
      %1099 = vmatpush1.bf16.msra.mxu0 0
      %1100 = vmatprep.subr.bf16.mxu0 0
      %1101 = vmatpush1.bf16.msra.mxu0 0
      %1102 = vmatprep.subr.bf16.mxu0 0
      %1103 = vmatpush1.bf16.msra.mxu0 0
      %1104 = vmatprep.subr.bf16.mxu0 0
      %1105 = vmatpush1.bf16.msra.mxu0 0
      %1106 = vmatprep.mubr.bf16.mxu0 0
      %1107 = vmatmul.mubr.bf16.gmra.mrb[0].mxu0 %v1020
      %v1108 = vpop.f32.mrb[0].mxu0
      %v1109 = vadd.f32 0.0, %v1108
      %v1110 = vpop.f32.mrb[0].mxu0
      %v1111 = vpop.f32.mrb[0].mxu0
      %v1112 = vadd.f32 0.0, %v1111
      %v1113 = vpop.f32.mrb[0].mxu0
      %1114 = vdwg.mxu0
      %v1115 = vadd.f32 %v978, %v1066
      %v1116 = vadd.f32 %v979, %v1068
      %v1117 = vadd.f32 %v980, %v1109
      %v1118 = vadd.f32 %v981, %v1070
      %v1119 = vadd.f32 %v982, %v1072
      %v1120 = vadd.f32 %v983, %v1112
      %v1121 = vld [vmem:[%s193] sm:$0x3f]
      %s1122 = scalar_lea.vmem %s1, 56
      %v1123 = vld [vmem:[%s1122] sm:$0xf]
      %v1124 = vld [vmem:[%s1122 + $0x4] sm:$0xf]
      %v1127 = vunpack.c.l.b16 %v1123
      %v1128 = vunpack.c.l.b16 %v1124
      %v1129 = vpack.c.b16 %v1128, %v1127
      %v1131 = vcombine.high %v1121, %v1121
      %v1133 = vunpack.c.l.s4 1983009808
      %v1134 = vunpack.c.0.s8 %v1133
      %v1135 = vlaneseq
      %v1136 = vshrl.u32 %v1135, 7
      %v1137 = vsub.s32 %v1134, %v1136
      %v1138 = vrot.slane %v1121, %v1137
      %v1140 = vunpack.c.l.s4 1983009808
      %v1141 = vunpack.c.0.s8 %v1140
      %v1142 = vlaneseq
      %v1143 = vshrl.u32 %v1142, 7
      %v1144 = vsub.s32 %v1141, %v1143
      %v1145 = vrot.slane %v1131, %v1144
      %v1146 = vcombine.high %v1138, %v1138
      %1147 = vrot.lane.b32.xlu0 %v1138, 91
      %v1148 = vpop.permute.xlu0 %1147
      %1149 = vrot.lane.b32.xlu0 %v1146, 91
      %v1150 = vpop.permute.xlu0 %1149
      %1151 = vrot.lane.b32.xlu0 %v1145, 91
      %v1152 = vpop.permute.xlu0 %1151
      %vm1153 = vcmask 744448
      %v1154 = vsel %vm1153, %v1148, %v1150
      %v1155 = vsel %vm1153, %v1150, %v1152
      %v1157 = vsel %vm237, %v1129, 0
      %v1160 = vsel %vm241, %v1154, 0
      %v1163 = vsel %vm241, %v1155, 0
      %v1166 = vsel %vm241, %v1152, 0
      %1168 = vmatprep.subr.bf16.mxu0 %v1163
      %1169 = vmatpush1.bf16.msra.mxu0 %v1160
      %1170 = vmatprep.subr.bf16.mxu0 0
      %1171 = vmatpush1.bf16.msra.mxu0 0
      %1172 = vmatprep.subr.bf16.mxu0 0
      %1173 = vmatpush1.bf16.msra.mxu0 0
      %1174 = vmatprep.subr.bf16.mxu0 0
      %1175 = vmatpush1.bf16.msra.mxu0 0
      %1176 = vmatprep.subr.bf16.mxu0 0
      %1177 = vmatpush1.bf16.msra.mxu0 0
      %1178 = vmatprep.subr.bf16.mxu0 0
      %1179 = vmatpush1.bf16.msra.mxu0 0
      %1180 = vmatprep.subr.bf16.mxu0 0
      %1181 = vmatpush1.bf16.msra.mxu0 0
      %1182 = vmatprep.subr.bf16.mxu0 0
      %1183 = vmatpush1.bf16.msra.mxu0 0
      %1184 = vmatprep.subr.bf16.mxu0 0
      %1185 = vmatpush1.bf16.msra.mxu0 0
      %1186 = vmatprep.subr.bf16.mxu0 0
      %1187 = vmatpush1.bf16.msra.mxu0 0
      %1188 = vmatprep.subr.bf16.mxu0 0
      %1189 = vmatpush1.bf16.msra.mxu0 0
      %1190 = vmatprep.subr.bf16.mxu0 0
      %1191 = vmatpush1.bf16.msra.mxu0 0
      %1192 = vmatprep.subr.bf16.mxu0 0
      %1193 = vmatpush1.bf16.msra.mxu0 0
      %1194 = vmatprep.subr.bf16.mxu0 0
      %1195 = vmatpush1.bf16.msra.mxu0 0
      %1196 = vmatprep.subr.bf16.mxu0 0
      %1197 = vmatpush1.bf16.msra.mxu0 0
      %1198 = vmatprep.subr.bf16.mxu0 0
      %1199 = vmatpush1.bf16.msra.mxu0 0
      %1200 = vmatprep.mubr.bf16.mxu0 0
      %1201 = vmatmul.mubr.bf16.gmra.mrb[0].mxu0 %v1157
      %v1202 = vpop.f32.mrb[0].mxu0
      %v1203 = vadd.f32 0.0, %v1202
      %v1204 = vpop.f32.mrb[0].mxu0
      %v1205 = vadd.f32 0.0, %v1204
      %v1206 = vpop.f32.mrb[0].mxu0
      %v1207 = vadd.f32 0.0, %v1206
      %v1208 = vpop.f32.mrb[0].mxu0
      %v1209 = vadd.f32 0.0, %v1208
      %1210 = vdwg.mxu0
      %1211 = vmatprep.subr.bf16.mxu0 0
      %1212 = vmatpush1.bf16.msra.mxu0 %v1166
      %1213 = vmatprep.subr.bf16.mxu0 0
      %1214 = vmatpush1.bf16.msra.mxu0 0
      %1215 = vmatprep.subr.bf16.mxu0 0
      %1216 = vmatpush1.bf16.msra.mxu0 0
      %1217 = vmatprep.subr.bf16.mxu0 0
      %1218 = vmatpush1.bf16.msra.mxu0 0
      %1219 = vmatprep.subr.bf16.mxu0 0
      %1220 = vmatpush1.bf16.msra.mxu0 0
      %1221 = vmatprep.subr.bf16.mxu0 0
      %1222 = vmatpush1.bf16.msra.mxu0 0
      %1223 = vmatprep.subr.bf16.mxu0 0
      %1224 = vmatpush1.bf16.msra.mxu0 0
      %1225 = vmatprep.subr.bf16.mxu0 0
      %1226 = vmatpush1.bf16.msra.mxu0 0
      %1227 = vmatprep.subr.bf16.mxu0 0
      %1228 = vmatpush1.bf16.msra.mxu0 0
      %1229 = vmatprep.subr.bf16.mxu0 0
      %1230 = vmatpush1.bf16.msra.mxu0 0
      %1231 = vmatprep.subr.bf16.mxu0 0
      %1232 = vmatpush1.bf16.msra.mxu0 0
      %1233 = vmatprep.subr.bf16.mxu0 0
      %1234 = vmatpush1.bf16.msra.mxu0 0
      %1235 = vmatprep.subr.bf16.mxu0 0
      %1236 = vmatpush1.bf16.msra.mxu0 0
      %1237 = vmatprep.subr.bf16.mxu0 0
      %1238 = vmatpush1.bf16.msra.mxu0 0
      %1239 = vmatprep.subr.bf16.mxu0 0
      %1240 = vmatpush1.bf16.msra.mxu0 0
      %1241 = vmatprep.subr.bf16.mxu0 0
      %1242 = vmatpush1.bf16.msra.mxu0 0
      %1243 = vmatprep.mubr.bf16.mxu0 0
      %1244 = vmatmul.mubr.bf16.gmra.mrb[0].mxu0 %v1157
      %v1245 = vpop.f32.mrb[0].mxu0
      %v1246 = vadd.f32 0.0, %v1245
      %v1247 = vpop.f32.mrb[0].mxu0
      %v1248 = vpop.f32.mrb[0].mxu0
      %v1249 = vadd.f32 0.0, %v1248
      %v1250 = vpop.f32.mrb[0].mxu0
      %1251 = vdwg.mxu0
      %v1252 = vadd.f32 %v1115, %v1203
      %v1253 = vadd.f32 %v1116, %v1205
      %v1254 = vadd.f32 %v1117, %v1246
      %v1255 = vadd.f32 %v1118, %v1207
      %v1256 = vadd.f32 %v1119, %v1209
      %v1257 = vadd.f32 %v1120, %v1249
      %v1258 = vld [vmem:[%s193] sm:$0x3f]
      %s1259 = scalar_lea.vmem %s1, 64
      %v1260 = vld [vmem:[%s1259] sm:$0xf]
      %v1261 = vld [vmem:[%s1259 + $0x4] sm:$0xf]
      %v1264 = vunpack.c.l.b16 %v1260
      %v1265 = vunpack.c.l.b16 %v1261
      %v1266 = vpack.c.b16 %v1265, %v1264
      %v1268 = vcombine.high %v1258, %v1258
      %v1270 = vunpack.c.l.s4 1983009808
      %v1271 = vunpack.c.0.s8 %v1270
      %v1272 = vlaneseq
      %v1273 = vshrl.u32 %v1272, 7
      %v1274 = vsub.s32 %v1271, %v1273
      %v1275 = vrot.slane %v1258, %v1274
      %v1277 = vunpack.c.l.s4 1983009808
      %v1278 = vunpack.c.0.s8 %v1277
      %v1279 = vlaneseq
      %v1280 = vshrl.u32 %v1279, 7
      %v1281 = vsub.s32 %v1278, %v1280
      %v1282 = vrot.slane %v1268, %v1281
      %v1283 = vcombine.high %v1275, %v1275
      %1284 = vrot.lane.b32.xlu0 %v1275, 90
      %v1285 = vpop.permute.xlu0 %1284
      %1286 = vrot.lane.b32.xlu0 %v1283, 90
      %v1287 = vpop.permute.xlu0 %1286
      %1288 = vrot.lane.b32.xlu0 %v1282, 90
      %v1289 = vpop.permute.xlu0 %1288
      %vm1290 = vcmask 736256
      %v1291 = vsel %vm1290, %v1285, %v1287
      %v1292 = vsel %vm1290, %v1287, %v1289
      %v1294 = vsel %vm237, %v1266, 0
      %v1297 = vsel %vm241, %v1291, 0
      %v1300 = vsel %vm241, %v1292, 0
      %v1303 = vsel %vm241, %v1289, 0
      %1305 = vmatprep.subr.bf16.mxu0 %v1300
      %1306 = vmatpush1.bf16.msra.mxu0 %v1297
      %1307 = vmatprep.subr.bf16.mxu0 0
      %1308 = vmatpush1.bf16.msra.mxu0 0
      %1309 = vmatprep.subr.bf16.mxu0 0
      %1310 = vmatpush1.bf16.msra.mxu0 0
      %1311 = vmatprep.subr.bf16.mxu0 0
      %1312 = vmatpush1.bf16.msra.mxu0 0
      %1313 = vmatprep.subr.bf16.mxu0 0
      %1314 = vmatpush1.bf16.msra.mxu0 0
      %1315 = vmatprep.subr.bf16.mxu0 0
      %1316 = vmatpush1.bf16.msra.mxu0 0
      %1317 = vmatprep.subr.bf16.mxu0 0
      %1318 = vmatpush1.bf16.msra.mxu0 0
      %1319 = vmatprep.subr.bf16.mxu0 0
      %1320 = vmatpush1.bf16.msra.mxu0 0
      %1321 = vmatprep.subr.bf16.mxu0 0
      %1322 = vmatpush1.bf16.msra.mxu0 0
      %1323 = vmatprep.subr.bf16.mxu0 0
      %1324 = vmatpush1.bf16.msra.mxu0 0
      %1325 = vmatprep.subr.bf16.mxu0 0
      %1326 = vmatpush1.bf16.msra.mxu0 0
      %1327 = vmatprep.subr.bf16.mxu0 0
      %1328 = vmatpush1.bf16.msra.mxu0 0
      %1329 = vmatprep.subr.bf16.mxu0 0
      %1330 = vmatpush1.bf16.msra.mxu0 0
      %1331 = vmatprep.subr.bf16.mxu0 0
      %1332 = vmatpush1.bf16.msra.mxu0 0
      %1333 = vmatprep.subr.bf16.mxu0 0
      %1334 = vmatpush1.bf16.msra.mxu0 0
      %1335 = vmatprep.subr.bf16.mxu0 0
      %1336 = vmatpush1.bf16.msra.mxu0 0
      %1337 = vmatprep.mubr.bf16.mxu0 0
      %1338 = vmatmul.mubr.bf16.gmra.mrb[0].mxu0 %v1294
      %v1339 = vpop.f32.mrb[0].mxu0
      %v1340 = vadd.f32 0.0, %v1339
      %v1341 = vpop.f32.mrb[0].mxu0
      %v1342 = vadd.f32 0.0, %v1341
      %v1343 = vpop.f32.mrb[0].mxu0
      %v1344 = vadd.f32 0.0, %v1343
      %v1345 = vpop.f32.mrb[0].mxu0
      %v1346 = vadd.f32 0.0, %v1345
      %1347 = vdwg.mxu0
      %1348 = vmatprep.subr.bf16.mxu0 0
      %1349 = vmatpush1.bf16.msra.mxu0 %v1303
      %1350 = vmatprep.subr.bf16.mxu0 0
      %1351 = vmatpush1.bf16.msra.mxu0 0
      %1352 = vmatprep.subr.bf16.mxu0 0
      %1353 = vmatpush1.bf16.msra.mxu0 0
      %1354 = vmatprep.subr.bf16.mxu0 0
      %1355 = vmatpush1.bf16.msra.mxu0 0
      %1356 = vmatprep.subr.bf16.mxu0 0
      %1357 = vmatpush1.bf16.msra.mxu0 0
      %1358 = vmatprep.subr.bf16.mxu0 0
      %1359 = vmatpush1.bf16.msra.mxu0 0
      %1360 = vmatprep.subr.bf16.mxu0 0
      %1361 = vmatpush1.bf16.msra.mxu0 0
      %1362 = vmatprep.subr.bf16.mxu0 0
      %1363 = vmatpush1.bf16.msra.mxu0 0
      %1364 = vmatprep.subr.bf16.mxu0 0
      %1365 = vmatpush1.bf16.msra.mxu0 0
      %1366 = vmatprep.subr.bf16.mxu0 0
      %1367 = vmatpush1.bf16.msra.mxu0 0
      %1368 = vmatprep.subr.bf16.mxu0 0
      %1369 = vmatpush1.bf16.msra.mxu0 0
      %1370 = vmatprep.subr.bf16.mxu0 0
      %1371 = vmatpush1.bf16.msra.mxu0 0
      %1372 = vmatprep.subr.bf16.mxu0 0
      %1373 = vmatpush1.bf16.msra.mxu0 0
      %1374 = vmatprep.subr.bf16.mxu0 0
      %1375 = vmatpush1.bf16.msra.mxu0 0
      %1376 = vmatprep.subr.bf16.mxu0 0
      %1377 = vmatpush1.bf16.msra.mxu0 0
      %1378 = vmatprep.subr.bf16.mxu0 0
      %1379 = vmatpush1.bf16.msra.mxu0 0
      %1380 = vmatprep.mubr.bf16.mxu0 0
      %1381 = vmatmul.mubr.bf16.gmra.mrb[0].mxu0 %v1294
      %v1382 = vpop.f32.mrb[0].mxu0
      %v1383 = vadd.f32 0.0, %v1382
      %v1384 = vpop.f32.mrb[0].mxu0
      %v1385 = vpop.f32.mrb[0].mxu0
      %v1386 = vadd.f32 0.0, %v1385
      %v1387 = vpop.f32.mrb[0].mxu0
      %1388 = vdwg.mxu0
      %v1389 = vadd.f32 %v1252, %v1340
      %v1390 = vadd.f32 %v1253, %v1342
      %v1391 = vadd.f32 %v1254, %v1383
      %v1392 = vadd.f32 %v1255, %v1344
      %v1393 = vadd.f32 %v1256, %v1346
      %v1394 = vadd.f32 %v1257, %v1386
      %v1395 = vld [vmem:[%s2] sm:$0xff]
      %v1396 = vld [vmem:[%s2 + $0x8] sm:$0xff]
      %1398 = vset.pattern.permute.xlu0 0
      %1399 = vperm.xlu0 %1398, %v1395
      %v1400 = vpop.permute.xlu0 %1399
      %1403 = vset.pattern.permute.xlu0 0
      %1404 = vperm.xlu0 %1403, %v1396
      %v1405 = vpop.permute.xlu0 %1404
      %v1407 = vadd.f32 %v1389, %v1400
      %v1408 = vadd.f32 %v1390, %v1400
      %v1409 = vadd.f32 %v1391, %v1400
      %v1410 = vadd.f32 %v1392, %v1405
      %v1411 = vadd.f32 %v1393, %v1405
      %v1412 = vadd.f32 %v1394, %v1405
      %s1413 = sld [smem:[#allocation2]]
      %vm1414 = vcmp.gt.f32.partialorder %v1407, 0.0
      %vm1415 = vcmp.gt.f32.partialorder %v1408, 0.0
      %vm1416 = vcmp.gt.f32.partialorder %v1409, 0.0
      %vm1417 = vcmp.gt.f32.partialorder %v1410, 0.0
      %vm1418 = vcmp.gt.f32.partialorder %v1411, 0.0
      %vm1419 = vcmp.gt.f32.partialorder %v1412, 0.0
      %v1420 = vstv %s1413
      %v1421 = vmul.f32 %v1420, %v1407
      %v1422 = vmul.f32 %v1420, %v1408
      %v1423 = vmul.f32 %v1420, %v1409
      %v1424 = vmul.f32 %v1420, %v1410
      %v1425 = vmul.f32 %v1420, %v1411
      %v1426 = vmul.f32 %v1420, %v1412
      %v1427 = vsel %vm1414, %v1407, %v1421
      %v1428 = vsel %vm1415, %v1408, %v1422
      %v1429 = vsel %vm1416, %v1409, %v1423
      %v1430 = vsel %vm1417, %v1410, %v1424
      %v1431 = vsel %vm1418, %v1411, %v1425
      %v1432 = vsel %vm1419, %v1412, %v1426
      %1433 = vst [vmem:[%s198] sm:$0xff] %v1427
      %1434 = vst [vmem:[%s198 + $0x8] sm:$0xff] %v1428
      %vm1435 = vcmask 261120
      %1436 = vst.msk [vmem:[%s198 + $0x10] sm:$0xff] %vm1435, %v1429
      %1437 = vst [vmem:[%s198 + $0x18] sm:$0xff] %v1430
      %1438 = vst [vmem:[%s198 + $0x20] sm:$0xff] %v1431
      %1439 = vst.msk [vmem:[%s198 + $0x28] sm:$0xff] %vm1435, %v1432
      %p1440 = scmp.lt.s32.totalorder %s16, 1
      %s1441 = scalar_select %p1440, %s16, 1
      %s1442 = smul.addr %s1441, 6
      %s1443 = smul.addr %s1442, 8
      %s1444 = scalar_lea.vmem %s4, %s1443
      // Predicated region
      $region37: #{subpixel_conv_block.1} parent=35 // pred_check
        %p1445 = pneg %p123
      $region38: #{subpixel_conv_block.1} parent=35 // pred_check_branch
        %1447 = sbr.rel (%p1445) target = $region40
      $region39: #{subpixel_conv_block.1} parent=35 // pred_region
        _
      $region40: #{subpixel_conv_block.1} parent=35 // pred_fallthru
        _
    $region36: #{subpixel_conv_block.1} parent=5 // pred_fallthru
      _
    %p1448 = scmp.le.s32.totalorder 2, %s11
    // Predicated region
    $region41: #{subpixel_conv_block.1} parent=5 // pred_check
      %p1449 = pneg %p1448
    $region42: #{subpixel_conv_block.1} parent=5 // pred_check_branch
      %1451 = sbr.rel (%p1449) target = $region44
    $region43: #{subpixel_conv_block.1} parent=5 // pred_region
      %s1452 = ssub.s32 %s11, 2
      // Predicated region
      $region45: #{subpixel_conv_block.1} parent=43 // pred_check
        %p1453 = pneg %p129
      $region46: #{subpixel_conv_block.1} parent=43 // pred_check_branch
        %1455 = sbr.rel (%p1453) target = $region48
      $region47: #{subpixel_conv_block.1} parent=43 // pred_region
        %p1456 = scmp.lt.s32.totalorder %s17, 1
        %s1457 = scalar_select %p1456, %s17, 1
        %s1458 = smul.addr %s1457, 6
        %s1459 = smul.addr %s1458, 8
        %s1460 = scalar_lea.vmem %s4, %s1459
      $region48: #{subpixel_conv_block.1} parent=43 // pred_fallthru
        _
    $region44: #{subpixel_conv_block.1} parent=5 // pred_fallthru
      _
  $region6: #{subpixel_conv_block.1} parent=0 // loop_footer
    %s15 = sadd.s32 1, %s11
  $region7: #{subpixel_conv_block.1} parent=0 // loop_footer_branch
    %10 = sbr.rel target = $region3
  $region8: #{subpixel_conv_block.1} parent=0 // loop_exit
    _

</llo_original>
